<compile_context>
chip_gen: v7x
topology: tpu7x:2x2x1
jax: 0.10.0
libtpu: 0.0.40
codegen_flags: <defaults>
</compile_context>

<pallas_src>
import functools

import numpy as np
import jax
import jax.numpy as jnp
from jax import lax
from jax.experimental import pallas as pl
from jax.experimental.pallas import tpu as pltpu


def nearest_exact_indices(out_size: int, in_size: int) -> np.ndarray:
    """PyTorch 'nearest-exact': src = min(floor((dst + 0.5) * in/out), in - 1)."""
    dst = np.arange(out_size, dtype=np.float64)
    src = np.floor((dst + 0.5) * (in_size / out_size)).astype(np.int64)
    return np.minimum(src, in_size - 1).astype(np.int32)


def _resize_kernel(x_ref, spt_ref, sc_ref, o_ref, *scratch, f32_precision):
    # x_ref  : (1, C, H*W)         input slab for batch element n
    # spt_ref: (H*W, Ho*Wo)        fused spatial 0/1 selection (grid-constant)
    # sc_ref : (co_blk, C)         channel 0/1 selection block
    # o_ref  : (1, co_blk, Ho*Wo)  lane-dense output block
    # scratch: optional (C, Ho*Wo) VMEM scratch carrying the spatial result
    #          across the inner ("arbitrary") output-channel axis.
    if scratch:
        (y1_ref,) = scratch

        @pl.when(pl.program_id(1) == 0)
        def _():
            y1_ref[...] = jnp.dot(
                x_ref[0], spt_ref[...],
                preferred_element_type=jnp.float32,
                precision=f32_precision).astype(y1_ref.dtype)

        y1 = y1_ref[...]
    else:
        y1 = jnp.dot(
            x_ref[0], spt_ref[...],
            preferred_element_type=jnp.float32,
            precision=f32_precision).astype(x_ref.dtype)

    y = jnp.dot(sc_ref[...], y1,
                preferred_element_type=jnp.float32,
                precision=f32_precision)
    o_ref[0] = y.astype(o_ref.dtype)


def _vmem_capacity_bytes() -> int:
    try:
        cap = int(getattr(pltpu.get_tpu_info(), "vmem_capacity_bytes", 0))
        if cap > 0:
            return cap
    except Exception:
        pass
    return 64 << 20  # conservative (v7x-sized) fallback


def _choose_co_block(Co, C, HW, HWo, itemsize, budget_bytes, max_co_block=None):
    """Pick the output-channel block so the honestly-accounted per-step VMEM
    footprint (double buffers + scratch + f32 intermediates) fits the budget."""

    def need(cb):
        bufs = 2 * (C * HW + HW * HWo + cb * C + cb * HWo) * itemsize  # 2x-buffered operands
        scratch = C * HWo * itemsize                                    # spatial-result scratch
        interm = 4 * (C * HWo + cb * HWo)                               # f32 matmul outputs
        return bufs + scratch + interm + (2 << 20)                      # mosaic slack

    cap = Co if max_co_block is None else min(max_co_block, Co)
    if cap >= Co and need(Co) <= budget_bytes:
        return Co, Co, 1, need(Co)                 # co_blk, Co_pad, n_co, need

    align = 16 if itemsize == 2 else 8             # bf16 sublane packing wants x16
    co_pad = -(-Co // align) * align
    cands = [d for d in range(align, co_pad + 1, align)
             if co_pad % d == 0 and d <= max(cap, align) and need(d) <= budget_bytes]
    co_blk = max(cands) if cands else align
    # TODO(synk): if even co_blk == align overshoots the budget, the fixed
    # x-slab / SPt terms dominate and a source-channel / spatial-column
    # reduction axis would be needed; not required at module-typical sizes.
    return co_blk, co_pad, co_pad // co_blk, need(co_blk)


def _resize_nchw(x: jax.Array, Co: int, Ho: int, Wo: int, *, max_co_block=None) -> jax.Array:
    N, C, H, W = x.shape
    if (C, H, W) == (Co, Ho, Wo):
        return x                                   # same short-circuit as the module
    if not jnp.issubdtype(x.dtype, jnp.floating):
        # TODO(synk): integer/bool inputs would need a non-MXU gather path to
        # stay bit-exact; only float inputs are supported here.
        raise NotImplementedError("resize: only floating-point inputs supported")

    HW, HWo = H * W, Ho * Wo
    itemsize = jnp.dtype(x.dtype).itemsize

    vmem_cap = _vmem_capacity_bytes()
    budget = max(16 << 20, vmem_cap - (40 << 20))  # ~24 MiB on v7x, ~88 MiB on v5e/v6e
    co_blk, co_pad, n_co, vmem_need = _choose_co_block(
        Co, C, HW, HWo, itemsize, budget, max_co_block=max_co_block)

    cmap = nearest_exact_indices(Co, C)
    hmap = nearest_exact_indices(Ho, H)
    wmap = nearest_exact_indices(Wo, W)

    # Spatial selection, pre-transposed: SPt[h*W+w, h'*Wo+w'] = 1 iff
    # h == hmap[h'] and w == wmap[w'].  Shared across channels and batch.
    spt = np.zeros((HW, HWo), np.float32)
    src = (hmap[:, None].astype(np.int64) * W + wmap[None, :]).reshape(-1)
    spt[src, np.arange(HWo)] = 1.0
    # Channel selection: SC[c', c] = 1 iff c == cmap[c'] (zero rows in the pad).
    sc = np.zeros((co_pad, C), np.float32)
    sc[np.arange(Co), cmap] = 1.0

    # Stored in the input dtype: exact for 0/1 weights, no in-kernel casts.
    spt = jnp.asarray(spt, dtype=x.dtype)
    sc = jnp.asarray(sc, dtype=x.dtype)

    x_flat = x.reshape(N, C, HW)                   # free: contiguous merge of (H, W)

    # Pin precision on the f32 path so the 0/1 gather stays bit-exact even if
    # the backend's default f32 matmul would truncate to bf16.
    f32_precision = lax.Precision.HIGHEST if itemsize == 4 else None
    kernel = functools.partial(_resize_kernel, f32_precision=f32_precision)

    flops = N * (2 * C * HW * HWo + 2 * co_pad * C * HWo)
    bytes_accessed = (N * C * HW + HW * HWo + co_pad * C + N * co_pad * HWo) * itemsize
    vmem_limit = int(min(vmem_cap - (4 << 20),
                         max(32 << 20, vmem_need * 5 // 4 + (4 << 20))))

    if n_co == 1:
        grid = (N,)
        in_specs = [
            pl.BlockSpec((1, C, HW), lambda n: (n, 0, 0)),
            pl.BlockSpec((HW, HWo), lambda n: (0, 0)),
            pl.BlockSpec((co_pad, C), lambda n: (0, 0)),
        ]
        out_specs = pl.BlockSpec((1, co_pad, HWo), lambda n: (n, 0, 0))
        scratch_shapes = ()
        dim_sem = ("parallel",)
    else:
        # Inner (fastest) axis = output-channel blocks.  It carries the spatial
        # result in a VMEM scratch (computed under pl.when(j == 0)), so it must
        # be "arbitrary" (v7x megacore must not shard it); the batch axis stays
        # "parallel".  x / SPt block indices are constant along it, so neither
        # is re-streamed from HBM.
        grid = (N, n_co)
        in_specs = [
            pl.BlockSpec((1, C, HW), lambda n, j: (n, 0, 0)),
            pl.BlockSpec((HW, HWo), lambda n, j: (0, 0)),
            pl.BlockSpec((co_blk, C), lambda n, j: (j, 0)),
        ]
        out_specs = pl.BlockSpec((1, co_blk, HWo), lambda n, j: (n, j, 0))
        scratch_shapes = (pltpu.VMEM((C, HWo), x.dtype),)
        dim_sem = ("parallel", "arbitrary")

    out_flat = pl.pallas_call(
        kernel,
        out_shape=jax.ShapeDtypeStruct((N, co_pad, HWo), x.dtype),
        grid=grid,
        in_specs=in_specs,
        out_specs=out_specs,
        scratch_shapes=scratch_shapes,
        compiler_params=pltpu.CompilerParams(
            dimension_semantics=dim_sem,
            vmem_limit_bytes=vmem_limit),
        cost_estimate=pl.CostEstimate(
            flops=int(flops), transcendentals=0, bytes_accessed=int(bytes_accessed)),
    )(x_flat, spt, sc)

    if co_pad != Co:
        out_flat = out_flat[:, :Co, :]
    return out_flat.reshape(N, Co, Ho, Wo)


def resize(x: jax.Array, output_size) -> jax.Array:
    """Pallas equivalent of Resize(output_size)(x): nearest-exact resize of the
    channel and spatial dims.  Supports 3-D (N, C, L) and 4-D (N, C, H, W)."""
    output_size = tuple(int(s) for s in output_size)
    if x.ndim == 4:
        Co, Ho, Wo = output_size
        return _resize_nchw(x, Co, Ho, Wo)
    if x.ndim == 3:
        Co, Lo = output_size
        N, C, L = x.shape
        if (C, L) == (Co, Lo):
            return x
        out = _resize_nchw(x.reshape(N, C, 1, L), Co, 1, Lo)
        return out.reshape(N, Co, Lo)
    # TODO(synk): the 2-D (N, C) resize_tensor variant is not wired up.
    raise NotImplementedError("resize: only 3-D (N,C,L) / 4-D (N,C,H,W) inputs")


def _reference_nchw(x, Co, Ho, Wo):
    cmap = nearest_exact_indices(Co, x.shape[1])
    hmap = nearest_exact_indices(Ho, x.shape[2])
    wmap = nearest_exact_indices(Wo, x.shape[3])
    return x[:, cmap][:, :, hmap][:, :, :, wmap]


if __name__ == "__main__":
    key = jax.random.PRNGKey(0)

    # Primary: NCHW (2, 4, 16, 16) -> (8, 8, 8), float32 (downsample).
    x = jax.random.normal(key, (2, 4, 16, 16), dtype=jnp.float32)
    out = jax.block_until_ready(resize(x, (8, 8, 8)))
    ref = _reference_nchw(x, 8, 8, 8)
    assert out.shape == (2, 8, 8, 8) and out.dtype == x.dtype
    assert bool(jnp.all(out == ref)), "float32 mismatch vs nearest-exact reference"

    # bfloat16 input (bf16 MXU fast path; the gather stays exact).
    xb = x.astype(jnp.bfloat16)
    outb = jax.block_until_ready(resize(xb, (8, 8, 8)))
    refb = _reference_nchw(xb, 8, 8, 8)
    assert outb.dtype == jnp.bfloat16
    assert bool(jnp.all(outb == refb)), "bfloat16 mismatch vs nearest-exact reference"

    # Upsampling + non-multiple-of-8 output channels (single full Co block).
    x2 = jax.random.normal(jax.random.PRNGKey(1), (2, 4, 8, 8), dtype=jnp.float32)
    out2 = jax.block_until_ready(resize(x2, (6, 16, 16)))
    ref2 = _reference_nchw(x2, 6, 16, 16)
    assert out2.shape == (2, 6, 16, 16)
    assert bool(jnp.all(out2 == ref2)), "upsample mismatch vs nearest-exact reference"

    # Blocked-Co path (pl.when(j==0) scratch hoist + padded Co + "arbitrary"
    # inner axis), forced via max_co_block so it is exercised at small shapes.
    out3 = jax.block_until_ready(_resize_nchw(x, 12, 8, 8, max_co_block=8))
    ref3 = _reference_nchw(x, 12, 8, 8)
    assert out3.shape == (2, 12, 8, 8)
    assert bool(jnp.all(out3 == ref3)), "blocked-Co mismatch vs nearest-exact reference"

    # 3-D (N, C, L) variant.
    x4 = jax.random.normal(jax.random.PRNGKey(2), (2, 4, 16), dtype=jnp.float32)
    out4 = jax.block_until_ready(resize(x4, (8, 8)))
    ref4 = x4[:, nearest_exact_indices(8, 4)][:, :, nearest_exact_indices(8, 16)]
    assert out4.shape == (2, 8, 8)
    assert bool(jnp.all(out4 == ref4)), "3-D mismatch vs nearest-exact reference"

    # Identity short-circuit (module returns the input unchanged).
    assert resize(x, (4, 16, 16)) is x

    print("KERNEL_OK")
</pallas_src>

<mosaic_0001>
module attributes {stable_mosaic.version = 11 : i64} {
  func.func @_resize_kernel(%arg0: i32, %arg1: memref<1x4x256xf32, #tpu.memory_space<vmem>>, %arg2: memref<256x64xf32, #tpu.memory_space<vmem>>, %arg3: memref<8x4xf32, #tpu.memory_space<vmem>>, %arg4: memref<1x8x64xf32, #tpu.memory_space<vmem>>) attributes {dimension_semantics = [#tpu.dimension_semantics<parallel>], iteration_bounds = array<i64: 2>, scalar_prefetch = 0 : i64, scratch_operands = 0 : i64, tpu.core_type = #tpu.core_type<tc>, window_params = [{transform_indices = @transform_0, window_bounds = array<i64: 1, 4, 256>}, {pipeline_mode = #tpu.pipeline_mode<synchronous>, transform_indices = @transform_1, window_bounds = array<i64: 256, 64>}, {pipeline_mode = #tpu.pipeline_mode<synchronous>, transform_indices = @transform_2, window_bounds = array<i64: 8, 4>}, {transform_indices = @transform_3, window_bounds = array<i64: 1, 8, 64>}]} {
    %c0 = arith.constant 0 : index
    %c0_0 = arith.constant 0 : index
    %c0_1 = arith.constant 0 : index
    %0 = vector.load %arg1[%c0, %c0_0, %c0_1] : memref<1x4x256xf32, #tpu.memory_space<vmem>>, vector<1x4x256xf32>
    %1 = vector.shape_cast %0 : vector<1x4x256xf32> to vector<4x256xf32>
    %c0_2 = arith.constant 0 : index
    %c0_3 = arith.constant 0 : index
    %2 = vector.load %arg2[%c0_2, %c0_3] : memref<256x64xf32, #tpu.memory_space<vmem>>, vector<256x64xf32>
    %cst = arith.constant dense<0.000000e+00> : vector<4x64xf32>
    %3 = tpu.matmul %1, %2, %cst {dimension_numbers = #tpu.dot_dimension_numbers<[1], [0], [0], [1], [0, 0, 1, 1], [], []>, precision = #tpu.contract_precision<fp32>} : vector<4x256xf32>, vector<256x64xf32>, vector<4x64xf32> -> vector<4x64xf32>
    %c0_4 = arith.constant 0 : index
    %c0_5 = arith.constant 0 : index
    %4 = vector.load %arg3[%c0_4, %c0_5] : memref<8x4xf32, #tpu.memory_space<vmem>>, vector<8x4xf32>
    %cst_6 = arith.constant dense<0.000000e+00> : vector<8x64xf32>
    %5 = tpu.matmul %4, %3, %cst_6 {dimension_numbers = #tpu.dot_dimension_numbers<[1], [0], [0], [1], [0, 0, 1, 1], [], []>, precision = #tpu.contract_precision<fp32>} : vector<8x4xf32>, vector<4x64xf32>, vector<8x64xf32> -> vector<8x64xf32>
    %c0_7 = arith.constant 0 : index
    %c0_8 = arith.constant 0 : index
    %c0_9 = arith.constant 0 : index
    %6 = vector.load %arg4[%c0_7, %c0_8, %c0_9] : memref<1x8x64xf32, #tpu.memory_space<vmem>>, vector<1x8x64xf32>
    %7 = vector.shape_cast %6 : vector<1x8x64xf32> to vector<8x64xf32>
    %8 = vector.shape_cast %5 : vector<8x64xf32> to vector<1x8x64xf32>
    tpu.vector_store %arg4[%c0_7, %c0_8, %c0_9], %8 {strides = array<i32>} : memref<1x8x64xf32, #tpu.memory_space<vmem>>, vector<1x8x64xf32>,
    return
  }
  func.func @transform_0(%arg0: i32) -> (i32, i32, i32) {
    %c0_i32 = arith.constant 0 : i32
    %c0_i32_0 = arith.constant 0 : i32
    %c0_i32_1 = arith.constant 0 : i32
    return %arg0, %c0_i32, %c0_i32_0 : i32, i32, i32
  }
  func.func @transform_1(%arg0: i32) -> (i32, i32) {
    %c0_i32 = arith.constant 0 : i32
    %c0_i32_0 = arith.constant 0 : i32
    %c0_i32_1 = arith.constant 0 : i32
    return %c0_i32, %c0_i32_0 : i32, i32
  }
  func.func @transform_2(%arg0: i32) -> (i32, i32) {
    %c0_i32 = arith.constant 0 : i32
    %c0_i32_0 = arith.constant 0 : i32
    %c0_i32_1 = arith.constant 0 : i32
    return %c0_i32, %c0_i32_0 : i32, i32
  }
  func.func @transform_3(%arg0: i32) -> (i32, i32, i32) {
    %c0_i32 = arith.constant 0 : i32
    %c0_i32_0 = arith.constant 0 : i32
    %c0_i32_1 = arith.constant 0 : i32
    return %arg0, %c0_i32, %c0_i32_0 : i32, i32, i32
  }
}

</mosaic_0001>

<llo_original>
// kernel: tpu_custom_call.1
$region0: #{tpu_custom_call.1}
  #allocation0 [shape = 'u32[]', space=smem, size = 0x4, offset = 0x4, fixed_abs, tag = 'smem constant byte address 0x4 - core index']
  #allocation1 [shape = 'u32[144,128]{1,0:T(1,128)}', space=vmem, size = 0x12000, scoped, tag = 'internal scratch']
  %s0 = inlined_call_operand.vmem [shape: f32[2,4,256], index: 0, kind: input, shape index: {}]
  %s1 = inlined_call_operand.vmem [shape: f32[256,64], index: 1, kind: input, shape index: {}]
  %s2 = inlined_call_operand.vmem [shape: f32[8,4], index: 2, kind: input, shape index: {}]
  %s3 = inlined_call_operand.hbm [shape: f32[2,8,64], index: 3, kind: output, shape index: {}]
  %s4 = sld [smem:[#allocation0]]
  $region45: #{tpu_custom_call.1} parent=0
    _
  %s6 = ssub.s32 1, %s4
  %s7 = scalar_select 0, %s6, %s4
  $region1: #{tpu_custom_call.1} parent=0
    #allocation2 [shape = 'u8[8192]{0}', space=vmem, size = 0x2000, scoped, tag = 'output window, operand 0']
    #allocation3 [shape = 's32[2]{0}', space=sflag, size = 0x8, scoped, tag = 'scoped memory for tpu_custom_call.1']
    %8 = vsyncpa [#allocation3], 0
    %s9 = scalar_lea.sflag [#allocation3], 1
    %10 = vsyncpa %s9, 0
    loop: start=0, step=1, limit=4
    $region2: #{tpu_custom_call.1} parent=1 // loop_pre_header
      _
    $region3: #{tpu_custom_call.1} parent=1 // loop_header
      %s12 = sphi 0, %s16
      %p13 = scmp.ge.s32.totalorder %s12, 4
      %s22 = sphi 0, %s24
      %s25 = sphi 0, %s22
      %s26 = sphi 0, %s25
      %s42 = sphi 0, %s26
      %s46 = sphi 0, %s46
      %s48 = sphi 0, %s46
      %s49 = sphi 0, %s48
      %s63 = sphi 0, %s49
      %s67 = sphi 0, %s67
      %s69 = sphi 0, %s67
      %s70 = sphi 0, %s69
      %s84 = sphi 0, %s70
      %s90 = sphi 0, %s92
      %s93 = sphi 0, %s90
      %s94 = sphi 0, %s93
      %s110 = sphi 0, %s94
    $region4: #{tpu_custom_call.1} parent=1 // loop_header_branch
      %15 = sbr.rel (%p13) target = $region8
    $region5: #{tpu_custom_call.1} parent=1 // loop_body
      %s17 = ssub.s32 %s12, 1
      %s18 = ssub.s32 %s12, 2
      %s19 = sadd.s32 %s12, 1
      %s20 = ssub.s32 %s12, %s19
      %p21 = scmp.eq.s32.totalorder %s20, 0
      %s23 = sadd.s32 %s22, 1
      %s24 = scalar_select %p21, %s22, %s23
      %p27 = pneg %p21
      %p28 = scmp.eq.s32.totalorder %s12, 1
      %p29 = por %p27, %p28
      %p30 = scmp.ne.s32.totalorder %s22, %s25
      %p31 = scmp.eq.s32.totalorder %s12, 0
      %p32 = por %p30, %p31
      %p33 = scmp.ne.s32.totalorder %s22, %s25
      %p34 = scmp.eq.s32.totalorder %s17, 1
      %p35 = por %p33, %p34
      %p36 = scmp.ne.s32.totalorder %s25, %s26
      %p37 = scmp.eq.s32.totalorder %s17, 0
      %p38 = por %p36, %p37
      %p39 = scmp.ne.s32.totalorder %s25, %s26
      %p40 = scmp.eq.s32.totalorder %s18, 1
      %p41 = por %p39, %p40
      %p43 = scmp.ne.s32.totalorder %s26, %s42
      %p44 = scmp.eq.s32.totalorder %s18, 0
      %p45 = por %p43, %p44
      %s47 = sadd.s32 %s46, 1
      %p50 = scmp.eq.s32.totalorder %s12, 1
      %p51 = scmp.ne.s32.totalorder %s46, %s48
      %p52 = scmp.eq.s32.totalorder %s12, 0
      %p53 = por %p51, %p52
      %p54 = scmp.ne.s32.totalorder %s46, %s48
      %p55 = scmp.eq.s32.totalorder %s17, 1
      %p56 = por %p54, %p55
      %p57 = scmp.ne.s32.totalorder %s48, %s49
      %p58 = scmp.eq.s32.totalorder %s17, 0
      %p59 = por %p57, %p58
      %p60 = scmp.ne.s32.totalorder %s48, %s49
      %p61 = scmp.eq.s32.totalorder %s18, 1
      %p62 = por %p60, %p61
      %p64 = scmp.ne.s32.totalorder %s49, %s63
      %p65 = scmp.eq.s32.totalorder %s18, 0
      %p66 = por %p64, %p65
      %s68 = sadd.s32 %s67, 1
      %p71 = scmp.eq.s32.totalorder %s12, 1
      %p72 = scmp.ne.s32.totalorder %s67, %s69
      %p73 = scmp.eq.s32.totalorder %s12, 0
      %p74 = por %p72, %p73
      %p75 = scmp.ne.s32.totalorder %s67, %s69
      %p76 = scmp.eq.s32.totalorder %s17, 1
      %p77 = por %p75, %p76
      %p78 = scmp.ne.s32.totalorder %s69, %s70
      %p79 = scmp.eq.s32.totalorder %s17, 0
      %p80 = por %p78, %p79
      %p81 = scmp.ne.s32.totalorder %s69, %s70
      %p82 = scmp.eq.s32.totalorder %s18, 1
      %p83 = por %p81, %p82
      %p85 = scmp.ne.s32.totalorder %s70, %s84
      %p86 = scmp.eq.s32.totalorder %s18, 0
      %p87 = por %p85, %p86
      %s88 = ssub.s32 %s12, %s19
      %p89 = scmp.eq.s32.totalorder %s88, 0
      %s91 = sadd.s32 %s90, 1
      %s92 = scalar_select %p89, %s90, %s91
      %p95 = pneg %p89
      %p96 = scmp.eq.s32.totalorder %s12, 1
      %p97 = por %p95, %p96
      %p98 = scmp.ne.s32.totalorder %s90, %s93
      %p99 = scmp.eq.s32.totalorder %s12, 0
      %p100 = por %p98, %p99
      %p101 = scmp.ne.s32.totalorder %s90, %s93
      %p102 = scmp.eq.s32.totalorder %s17, 1
      %p103 = por %p101, %p102
      %p104 = scmp.ne.s32.totalorder %s93, %s94
      %p105 = scmp.eq.s32.totalorder %s17, 0
      %p106 = por %p104, %p105
      %p107 = scmp.ne.s32.totalorder %s93, %s94
      %p108 = scmp.eq.s32.totalorder %s18, 1
      %p109 = por %p107, %p108
      %p111 = scmp.ne.s32.totalorder %s94, %s110
      %p112 = scmp.eq.s32.totalorder %s18, 0
      %p113 = por %p111, %p112
      %p114 = scmp.le.s32.totalorder 1, %s12
      %p115 = scmp.lt.s32.totalorder %s12, 3
      %p116 = pnand %p114, %p115
      %p117 = pneg %p116
      // Predicated region
      $region9: #{tpu_custom_call.1} parent=5 // pred_check
        _
      $region10: #{tpu_custom_call.1} parent=5 // pred_check_branch
        %119 = sbr.rel (%p116) target = $region12
      $region11: #{tpu_custom_call.1} parent=5 // pred_region
        %s120 = ssub.s32 %s12, 1
        // Predicated region
        $region13: #{tpu_custom_call.1} parent=11 // pred_check
          %p121 = pneg %p59
        $region14: #{tpu_custom_call.1} parent=11 // pred_check_branch
          %123 = sbr.rel (%p121) target = $region16
        $region15: #{tpu_custom_call.1} parent=11 // pred_region
          _
        $region16: #{tpu_custom_call.1} parent=11 // pred_fallthru
          _
        // Predicated region
        $region17: #{tpu_custom_call.1} parent=11 // pred_check
          %p124 = pneg %p80
        $region18: #{tpu_custom_call.1} parent=11 // pred_check_branch
          %126 = sbr.rel (%p124) target = $region20
        $region19: #{tpu_custom_call.1} parent=11 // pred_region
          _
        $region20: #{tpu_custom_call.1} parent=11 // pred_fallthru
          _
      $region12: #{tpu_custom_call.1} parent=5 // pred_fallthru
        _
      %p127 = scmp.lt.s32.totalorder %s12, 2
      // Predicated region
      $region21: #{tpu_custom_call.1} parent=5 // pred_check
        %p128 = pneg %p127
      $region22: #{tpu_custom_call.1} parent=5 // pred_check_branch
        %130 = sbr.rel (%p128) target = $region24
      $region23: #{tpu_custom_call.1} parent=5 // pred_region
        // Predicated region
        $region25: #{tpu_custom_call.1} parent=23 // pred_check
          %p131 = pneg %p32
        $region26: #{tpu_custom_call.1} parent=23 // pred_check_branch
          %133 = sbr.rel (%p131) target = $region28
        $region27: #{tpu_custom_call.1} parent=23 // pred_region
          %p134 = scmp.lt.s32.totalorder %s12, 1
          %s135 = scalar_select %p134, %s12, 1
          %s136 = smul.addr %s135, 2
          %s137 = smul.addr %s136, 4
          %s138 = scalar_lea.vmem %s0, %s137
        $region28: #{tpu_custom_call.1} parent=23 // pred_fallthru
          _
      $region24: #{tpu_custom_call.1} parent=5 // pred_fallthru
        _
      %p139 = scmp.le.s32.totalorder 1, %s12
      %p140 = scmp.lt.s32.totalorder %s12, 3
      %p141 = pnand %p139, %p140
      %p142 = pneg %p141
      // Predicated region
      $region29: #{tpu_custom_call.1} parent=5 // pred_check
        _
      $region30: #{tpu_custom_call.1} parent=5 // pred_check_branch
        %144 = sbr.rel (%p141) target = $region32
      $region31: #{tpu_custom_call.1} parent=5 // pred_region
        %s145 = ssub.s32 %s12, 1
        %p146 = scmp.lt.s32.totalorder %s17, 1
        %s147 = scalar_select %p146, %s17, 1
        %s148 = smul.addr %s147, 2
        %s149 = smul.addr %s148, 4
        %s150 = scalar_lea.vmem %s0, %s149
        %p151 = pneg %p38
        %p152 = pneg %p35
        %p153 = pneg %p59
        %p154 = pneg %p56
        %p155 = pneg %p80
        %p156 = pneg %p77
        %p157 = pneg %p106
        %p158 = pneg %p103
        %s159 = sand.u32 %s93, 1
        %s160 = scalar_lea.sflag [#allocation3], %s159
        %s161 = sand.u32 %s93, 1
        %s162 = smul.addr %s161, 8
        %s163 = scalar_lea.vmem [#allocation2], %s162
        %p164 = scmp.lt.s32.totalorder %s17, 1
        %s165 = scalar_select %p164, %s17, 1
        %s166 = smul.addr %s165, 2
        %s167 = smul.addr %s166, 4
        %s168 = scalar_lea.vmem %s0, %s167
        %v169 = vld [vmem:[%s168] sm:$0xff]
        %v170 = vld [vmem:[%s1] sm:$0xff]
        %v171 = vld [vmem:[%s1 + $0x8] sm:$0xff]
        %v172 = vld [vmem:[%s1 + $0x10] sm:$0xff]
        %v173 = vld [vmem:[%s1 + $0x18] sm:$0xff]
        %v174 = vld [vmem:[%s1 + $0x20] sm:$0xff]
        %v175 = vld [vmem:[%s1 + $0x28] sm:$0xff]
        %v176 = vld [vmem:[%s1 + $0x30] sm:$0xff]
        %v177 = vld [vmem:[%s1 + $0x38] sm:$0xff]
        %v178 = vld [vmem:[%s1 + $0x40] sm:$0xff]
        %v179 = vld [vmem:[%s1 + $0x48] sm:$0xff]
        %v180 = vld [vmem:[%s1 + $0x50] sm:$0xff]
        %v181 = vld [vmem:[%s1 + $0x58] sm:$0xff]
        %v182 = vld [vmem:[%s1 + $0x60] sm:$0xff]
        %v183 = vld [vmem:[%s1 + $0x68] sm:$0xff]
        %v184 = vld [vmem:[%s1 + $0x70] sm:$0xff]
        %v185 = vld [vmem:[%s1 + $0x78] sm:$0xff]
        %v186 = vld [vmem:[%s1 + $0x80] sm:$0xff]
        %v187 = vld [vmem:[%s1 + $0x88] sm:$0xff]
        %v188 = vld [vmem:[%s1 + $0x90] sm:$0xff]
        %v189 = vld [vmem:[%s1 + $0x98] sm:$0xff]
        %v190 = vld [vmem:[%s1 + $0xa0] sm:$0xff]
        %v191 = vld [vmem:[%s1 + $0xa8] sm:$0xff]
        %v192 = vld [vmem:[%s1 + $0xb0] sm:$0xff]
        %v193 = vld [vmem:[%s1 + $0xb8] sm:$0xff]
        %v194 = vld [vmem:[%s1 + $0xc0] sm:$0xff]
        %v195 = vld [vmem:[%s1 + $0xc8] sm:$0xff]
        %v196 = vld [vmem:[%s1 + $0xd0] sm:$0xff]
        %v197 = vld [vmem:[%s1 + $0xd8] sm:$0xff]
        %v198 = vld [vmem:[%s1 + $0xe0] sm:$0xff]
        %v199 = vld [vmem:[%s1 + $0xe8] sm:$0xff]
        %v200 = vld [vmem:[%s1 + $0xf0] sm:$0xff]
        %v201 = vld [vmem:[%s1 + $0xf8] sm:$0xff]
        %v203 = vcombine.high %v169, %v169
        %205 = vmatprep.subr.mxu0 0.0
        %v206 = vand.u32 %v170, 4294901760
        %207 = vmatpush1.msra.mxu0 %v206
        %208 = vmatprep.subr.mxu0 0.0
        %v209 = vand.u32 %v171, 4294901760
        %210 = vmatpush1.msra.mxu0 %v209
        %211 = vmatprep.subr.mxu0 0.0
        %v212 = vand.u32 %v172, 4294901760
        %213 = vmatpush1.msra.mxu0 %v212
        %214 = vmatprep.subr.mxu0 0.0
        %v215 = vand.u32 %v173, 4294901760
        %216 = vmatpush1.msra.mxu0 %v215
        %217 = vmatprep.subr.mxu0 0.0
        %v218 = vand.u32 %v174, 4294901760
        %219 = vmatpush1.msra.mxu0 %v218
        %220 = vmatprep.subr.mxu0 0.0
        %v221 = vand.u32 %v175, 4294901760
        %222 = vmatpush1.msra.mxu0 %v221
        %223 = vmatprep.subr.mxu0 0.0
        %v224 = vand.u32 %v176, 4294901760
        %225 = vmatpush1.msra.mxu0 %v224
        %226 = vmatprep.subr.mxu0 0.0
        %v227 = vand.u32 %v177, 4294901760
        %228 = vmatpush1.msra.mxu0 %v227
        %229 = vmatprep.subr.mxu0 0.0
        %v230 = vand.u32 %v178, 4294901760
        %231 = vmatpush1.msra.mxu0 %v230
        %232 = vmatprep.subr.mxu0 0.0
        %v233 = vand.u32 %v179, 4294901760
        %234 = vmatpush1.msra.mxu0 %v233
        %235 = vmatprep.subr.mxu0 0.0
        %v236 = vand.u32 %v180, 4294901760
        %237 = vmatpush1.msra.mxu0 %v236
        %238 = vmatprep.subr.mxu0 0.0
        %v239 = vand.u32 %v181, 4294901760
        %240 = vmatpush1.msra.mxu0 %v239
        %241 = vmatprep.subr.mxu0 0.0
        %v242 = vand.u32 %v182, 4294901760
        %243 = vmatpush1.msra.mxu0 %v242
        %244 = vmatprep.subr.mxu0 0.0
        %v245 = vand.u32 %v183, 4294901760
        %246 = vmatpush1.msra.mxu0 %v245
        %247 = vmatprep.subr.mxu0 0.0
        %v248 = vand.u32 %v184, 4294901760
        %249 = vmatpush1.msra.mxu0 %v248
        %250 = vmatprep.subr.mxu0 0.0
        %v251 = vand.u32 %v185, 4294901760
        %252 = vmatpush1.msra.mxu0 %v251
        %253 = vmatprep.subr.mxu0 0.0
        %v254 = vand.u32 %v186, 4294901760
        %255 = vmatpush1.msra.mxu0 %v254
        %256 = vmatprep.subr.mxu0 0.0
        %v257 = vand.u32 %v187, 4294901760
        %258 = vmatpush1.msra.mxu0 %v257
        %259 = vmatprep.subr.mxu0 0.0
        %v260 = vand.u32 %v188, 4294901760
        %261 = vmatpush1.msra.mxu0 %v260
        %262 = vmatprep.subr.mxu0 0.0
        %v263 = vand.u32 %v189, 4294901760
        %264 = vmatpush1.msra.mxu0 %v263
        %265 = vmatprep.subr.mxu0 0.0
        %v266 = vand.u32 %v190, 4294901760
        %267 = vmatpush1.msra.mxu0 %v266
        %268 = vmatprep.subr.mxu0 0.0
        %v269 = vand.u32 %v191, 4294901760
        %270 = vmatpush1.msra.mxu0 %v269
        %271 = vmatprep.subr.mxu0 0.0
        %v272 = vand.u32 %v192, 4294901760
        %273 = vmatpush1.msra.mxu0 %v272
        %274 = vmatprep.subr.mxu0 0.0
        %v275 = vand.u32 %v193, 4294901760
        %276 = vmatpush1.msra.mxu0 %v275
        %277 = vmatprep.subr.mxu0 0.0
        %v278 = vand.u32 %v194, 4294901760
        %279 = vmatpush1.msra.mxu0 %v278
        %280 = vmatprep.subr.mxu0 0.0
        %v281 = vand.u32 %v195, 4294901760
        %282 = vmatpush1.msra.mxu0 %v281
        %283 = vmatprep.subr.mxu0 0.0
        %v284 = vand.u32 %v196, 4294901760
        %285 = vmatpush1.msra.mxu0 %v284
        %286 = vmatprep.subr.mxu0 0.0
        %v287 = vand.u32 %v197, 4294901760
        %288 = vmatpush1.msra.mxu0 %v287
        %289 = vmatprep.subr.mxu0 0.0
        %v290 = vand.u32 %v198, 4294901760
        %291 = vmatpush1.msra.mxu0 %v290
        %292 = vmatprep.subr.mxu0 0.0
        %v293 = vand.u32 %v199, 4294901760
        %294 = vmatpush1.msra.mxu0 %v293
        %295 = vmatprep.subr.mxu0 0.0
        %v296 = vand.u32 %v200, 4294901760
        %297 = vmatpush1.msra.mxu0 %v296
        %298 = vmatprep.subr.mxu0 0.0
        %v299 = vand.u32 %v201, 4294901760
        %300 = vmatpush1.msra.mxu0 %v299
        %v301 = vand.u32 %v203, 4294901760
        %v302 = vsub.f32 %v203, %v301
        %v303 = vand.u32 %v302, 4294901760
        %v304 = vsub.f32 %v302, %v303
        %v305 = vand.u32 %v304, 4294901760
        %306 = vmatprep.mubr.f32.mxu0 %v305
        %v307 = vand.u32 %v169, 4294901760
        %v308 = vsub.f32 %v169, %v307
        %v309 = vand.u32 %v308, 4294901760
        %v310 = vsub.f32 %v308, %v309
        %v311 = vand.u32 %v310, 4294901760
        %312 = vmatmul.mubr.f32.gmra.mrb[0].mxu0 %v311
        %v313 = vpop.f32.mrb[0].mxu0
        %v314 = vadd.f32 0.0, %v313
        %v315 = vpop.f32.mrb[0].mxu0
        %316 = vdwg.mxu0
        %317 = vmatprep.subr.mxu0 0.0
        %v318 = vand.u32 %v170, 4294901760
        %v319 = vsub.f32 %v170, %v318
        %v320 = vand.u32 %v319, 4294901760
        %v321 = vsub.f32 %v319, %v320
        %v322 = vand.u32 %v321, 4294901760
        %323 = vmatpush1.msra.mxu0 %v322
        %324 = vmatprep.subr.mxu0 0.0
        %v325 = vand.u32 %v171, 4294901760
        %v326 = vsub.f32 %v171, %v325
        %v327 = vand.u32 %v326, 4294901760
        %v328 = vsub.f32 %v326, %v327
        %v329 = vand.u32 %v328, 4294901760
        %330 = vmatpush1.msra.mxu0 %v329
        %331 = vmatprep.subr.mxu0 0.0
        %v332 = vand.u32 %v172, 4294901760
        %v333 = vsub.f32 %v172, %v332
        %v334 = vand.u32 %v333, 4294901760
        %v335 = vsub.f32 %v333, %v334
        %v336 = vand.u32 %v335, 4294901760
        %337 = vmatpush1.msra.mxu0 %v336
        %338 = vmatprep.subr.mxu0 0.0
        %v339 = vand.u32 %v173, 4294901760
        %v340 = vsub.f32 %v173, %v339
        %v341 = vand.u32 %v340, 4294901760
        %v342 = vsub.f32 %v340, %v341
        %v343 = vand.u32 %v342, 4294901760
        %344 = vmatpush1.msra.mxu0 %v343
        %345 = vmatprep.subr.mxu0 0.0
        %v346 = vand.u32 %v174, 4294901760
        %v347 = vsub.f32 %v174, %v346
        %v348 = vand.u32 %v347, 4294901760
        %v349 = vsub.f32 %v347, %v348
        %v350 = vand.u32 %v349, 4294901760
        %351 = vmatpush1.msra.mxu0 %v350
        %352 = vmatprep.subr.mxu0 0.0
        %v353 = vand.u32 %v175, 4294901760
        %v354 = vsub.f32 %v175, %v353
        %v355 = vand.u32 %v354, 4294901760
        %v356 = vsub.f32 %v354, %v355
        %v357 = vand.u32 %v356, 4294901760
        %358 = vmatpush1.msra.mxu0 %v357
        %359 = vmatprep.subr.mxu0 0.0
        %v360 = vand.u32 %v176, 4294901760
        %v361 = vsub.f32 %v176, %v360
        %v362 = vand.u32 %v361, 4294901760
        %v363 = vsub.f32 %v361, %v362
        %v364 = vand.u32 %v363, 4294901760
        %365 = vmatpush1.msra.mxu0 %v364
        %366 = vmatprep.subr.mxu0 0.0
        %v367 = vand.u32 %v177, 4294901760
        %v368 = vsub.f32 %v177, %v367
        %v369 = vand.u32 %v368, 4294901760
        %v370 = vsub.f32 %v368, %v369
        %v371 = vand.u32 %v370, 4294901760
        %372 = vmatpush1.msra.mxu0 %v371
        %373 = vmatprep.subr.mxu0 0.0
        %v374 = vand.u32 %v178, 4294901760
        %v375 = vsub.f32 %v178, %v374
        %v376 = vand.u32 %v375, 4294901760
        %v377 = vsub.f32 %v375, %v376
        %v378 = vand.u32 %v377, 4294901760
        %379 = vmatpush1.msra.mxu0 %v378
        %380 = vmatprep.subr.mxu0 0.0
        %v381 = vand.u32 %v179, 4294901760
        %v382 = vsub.f32 %v179, %v381
        %v383 = vand.u32 %v382, 4294901760
        %v384 = vsub.f32 %v382, %v383
        %v385 = vand.u32 %v384, 4294901760
        %386 = vmatpush1.msra.mxu0 %v385
        %387 = vmatprep.subr.mxu0 0.0
        %v388 = vand.u32 %v180, 4294901760
        %v389 = vsub.f32 %v180, %v388
        %v390 = vand.u32 %v389, 4294901760
        %v391 = vsub.f32 %v389, %v390
        %v392 = vand.u32 %v391, 4294901760
        %393 = vmatpush1.msra.mxu0 %v392
        %394 = vmatprep.subr.mxu0 0.0
        %v395 = vand.u32 %v181, 4294901760
        %v396 = vsub.f32 %v181, %v395
        %v397 = vand.u32 %v396, 4294901760
        %v398 = vsub.f32 %v396, %v397
        %v399 = vand.u32 %v398, 4294901760
        %400 = vmatpush1.msra.mxu0 %v399
        %401 = vmatprep.subr.mxu0 0.0
        %v402 = vand.u32 %v182, 4294901760
        %v403 = vsub.f32 %v182, %v402
        %v404 = vand.u32 %v403, 4294901760
        %v405 = vsub.f32 %v403, %v404
        %v406 = vand.u32 %v405, 4294901760
        %407 = vmatpush1.msra.mxu0 %v406
        %408 = vmatprep.subr.mxu0 0.0
        %v409 = vand.u32 %v183, 4294901760
        %v410 = vsub.f32 %v183, %v409
        %v411 = vand.u32 %v410, 4294901760
        %v412 = vsub.f32 %v410, %v411
        %v413 = vand.u32 %v412, 4294901760
        %414 = vmatpush1.msra.mxu0 %v413
        %415 = vmatprep.subr.mxu0 0.0
        %v416 = vand.u32 %v184, 4294901760
        %v417 = vsub.f32 %v184, %v416
        %v418 = vand.u32 %v417, 4294901760
        %v419 = vsub.f32 %v417, %v418
        %v420 = vand.u32 %v419, 4294901760
        %421 = vmatpush1.msra.mxu0 %v420
        %422 = vmatprep.subr.mxu0 0.0
        %v423 = vand.u32 %v185, 4294901760
        %v424 = vsub.f32 %v185, %v423
        %v425 = vand.u32 %v424, 4294901760
        %v426 = vsub.f32 %v424, %v425
        %v427 = vand.u32 %v426, 4294901760
        %428 = vmatpush1.msra.mxu0 %v427
        %429 = vmatprep.subr.mxu0 0.0
        %v430 = vand.u32 %v186, 4294901760
        %v431 = vsub.f32 %v186, %v430
        %v432 = vand.u32 %v431, 4294901760
        %v433 = vsub.f32 %v431, %v432
        %v434 = vand.u32 %v433, 4294901760
        %435 = vmatpush1.msra.mxu0 %v434
        %436 = vmatprep.subr.mxu0 0.0
        %v437 = vand.u32 %v187, 4294901760
        %v438 = vsub.f32 %v187, %v437
        %v439 = vand.u32 %v438, 4294901760
        %v440 = vsub.f32 %v438, %v439
        %v441 = vand.u32 %v440, 4294901760
        %442 = vmatpush1.msra.mxu0 %v441
        %443 = vmatprep.subr.mxu0 0.0
        %v444 = vand.u32 %v188, 4294901760
        %v445 = vsub.f32 %v188, %v444
        %v446 = vand.u32 %v445, 4294901760
        %v447 = vsub.f32 %v445, %v446
        %v448 = vand.u32 %v447, 4294901760
        %449 = vmatpush1.msra.mxu0 %v448
        %450 = vmatprep.subr.mxu0 0.0
        %v451 = vand.u32 %v189, 4294901760
        %v452 = vsub.f32 %v189, %v451
        %v453 = vand.u32 %v452, 4294901760
        %v454 = vsub.f32 %v452, %v453
        %v455 = vand.u32 %v454, 4294901760
        %456 = vmatpush1.msra.mxu0 %v455
        %457 = vmatprep.subr.mxu0 0.0
        %v458 = vand.u32 %v190, 4294901760
        %v459 = vsub.f32 %v190, %v458
        %v460 = vand.u32 %v459, 4294901760
        %v461 = vsub.f32 %v459, %v460
        %v462 = vand.u32 %v461, 4294901760
        %463 = vmatpush1.msra.mxu0 %v462
        %464 = vmatprep.subr.mxu0 0.0
        %v465 = vand.u32 %v191, 4294901760
        %v466 = vsub.f32 %v191, %v465
        %v467 = vand.u32 %v466, 4294901760
        %v468 = vsub.f32 %v466, %v467
        %v469 = vand.u32 %v468, 4294901760
        %470 = vmatpush1.msra.mxu0 %v469
        %471 = vmatprep.subr.mxu0 0.0
        %v472 = vand.u32 %v192, 4294901760
        %v473 = vsub.f32 %v192, %v472
        %v474 = vand.u32 %v473, 4294901760
        %v475 = vsub.f32 %v473, %v474
        %v476 = vand.u32 %v475, 4294901760
        %477 = vmatpush1.msra.mxu0 %v476
        %478 = vmatprep.subr.mxu0 0.0
        %v479 = vand.u32 %v193, 4294901760
        %v480 = vsub.f32 %v193, %v479
        %v481 = vand.u32 %v480, 4294901760
        %v482 = vsub.f32 %v480, %v481
        %v483 = vand.u32 %v482, 4294901760
        %484 = vmatpush1.msra.mxu0 %v483
        %485 = vmatprep.subr.mxu0 0.0
        %v486 = vand.u32 %v194, 4294901760
        %v487 = vsub.f32 %v194, %v486
        %v488 = vand.u32 %v487, 4294901760
        %v489 = vsub.f32 %v487, %v488
        %v490 = vand.u32 %v489, 4294901760
        %491 = vmatpush1.msra.mxu0 %v490
        %492 = vmatprep.subr.mxu0 0.0
        %v493 = vand.u32 %v195, 4294901760
        %v494 = vsub.f32 %v195, %v493
        %v495 = vand.u32 %v494, 4294901760
        %v496 = vsub.f32 %v494, %v495
        %v497 = vand.u32 %v496, 4294901760
        %498 = vmatpush1.msra.mxu0 %v497
        %499 = vmatprep.subr.mxu0 0.0
        %v500 = vand.u32 %v196, 4294901760
        %v501 = vsub.f32 %v196, %v500
        %v502 = vand.u32 %v501, 4294901760
        %v503 = vsub.f32 %v501, %v502
        %v504 = vand.u32 %v503, 4294901760
        %505 = vmatpush1.msra.mxu0 %v504
        %506 = vmatprep.subr.mxu0 0.0
        %v507 = vand.u32 %v197, 4294901760
        %v508 = vsub.f32 %v197, %v507
        %v509 = vand.u32 %v508, 4294901760
        %v510 = vsub.f32 %v508, %v509
        %v511 = vand.u32 %v510, 4294901760
        %512 = vmatpush1.msra.mxu0 %v511
        %513 = vmatprep.subr.mxu0 0.0
        %v514 = vand.u32 %v198, 4294901760
        %v515 = vsub.f32 %v198, %v514
        %v516 = vand.u32 %v515, 4294901760
        %v517 = vsub.f32 %v515, %v516
        %v518 = vand.u32 %v517, 4294901760
        %519 = vmatpush1.msra.mxu0 %v518
        %520 = vmatprep.subr.mxu0 0.0
        %v521 = vand.u32 %v199, 4294901760
        %v522 = vsub.f32 %v199, %v521
        %v523 = vand.u32 %v522, 4294901760
        %v524 = vsub.f32 %v522, %v523
        %v525 = vand.u32 %v524, 4294901760
        %526 = vmatpush1.msra.mxu0 %v525
        %527 = vmatprep.subr.mxu0 0.0
        %v528 = vand.u32 %v200, 4294901760
        %v529 = vsub.f32 %v200, %v528
        %v530 = vand.u32 %v529, 4294901760
        %v531 = vsub.f32 %v529, %v530
        %v532 = vand.u32 %v531, 4294901760
        %533 = vmatpush1.msra.mxu0 %v532
        %534 = vmatprep.subr.mxu0 0.0
        %v535 = vand.u32 %v201, 4294901760
        %v536 = vsub.f32 %v201, %v535
        %v537 = vand.u32 %v536, 4294901760
        %v538 = vsub.f32 %v536, %v537
        %v539 = vand.u32 %v538, 4294901760
        %540 = vmatpush1.msra.mxu0 %v539
        %v541 = vand.u32 %v203, 4294901760
        %542 = vmatprep.mubr.f32.mxu0 %v541
        %v543 = vand.u32 %v169, 4294901760
        %544 = vmatmul.mubr.f32.gmra.mrb[0].mxu0 %v543
        %v545 = vpop.f32.mrb[0].mxu0
        %v546 = vadd.f32 %v314, %v545
        %v547 = vpop.f32.mrb[0].mxu0
        %548 = vdwg.mxu0
        %549 = vmatprep.subr.mxu0 0.0
        %v550 = vand.u32 %v170, 4294901760
        %v551 = vsub.f32 %v170, %v550
        %552 = vmatpush1.msra.mxu0 %v551
        %553 = vmatprep.subr.mxu0 0.0
        %v554 = vand.u32 %v171, 4294901760
        %v555 = vsub.f32 %v171, %v554
        %556 = vmatpush1.msra.mxu0 %v555
        %557 = vmatprep.subr.mxu0 0.0
        %v558 = vand.u32 %v172, 4294901760
        %v559 = vsub.f32 %v172, %v558
        %560 = vmatpush1.msra.mxu0 %v559
        %561 = vmatprep.subr.mxu0 0.0
        %v562 = vand.u32 %v173, 4294901760
        %v563 = vsub.f32 %v173, %v562
        %564 = vmatpush1.msra.mxu0 %v563
        %565 = vmatprep.subr.mxu0 0.0
        %v566 = vand.u32 %v174, 4294901760
        %v567 = vsub.f32 %v174, %v566
        %568 = vmatpush1.msra.mxu0 %v567
        %569 = vmatprep.subr.mxu0 0.0
        %v570 = vand.u32 %v175, 4294901760
        %v571 = vsub.f32 %v175, %v570
        %572 = vmatpush1.msra.mxu0 %v571
        %573 = vmatprep.subr.mxu0 0.0
        %v574 = vand.u32 %v176, 4294901760
        %v575 = vsub.f32 %v176, %v574
        %576 = vmatpush1.msra.mxu0 %v575
        %577 = vmatprep.subr.mxu0 0.0
        %v578 = vand.u32 %v177, 4294901760
        %v579 = vsub.f32 %v177, %v578
        %580 = vmatpush1.msra.mxu0 %v579
        %581 = vmatprep.subr.mxu0 0.0
        %v582 = vand.u32 %v178, 4294901760
        %v583 = vsub.f32 %v178, %v582
        %584 = vmatpush1.msra.mxu0 %v583
        %585 = vmatprep.subr.mxu0 0.0
        %v586 = vand.u32 %v179, 4294901760
        %v587 = vsub.f32 %v179, %v586
        %588 = vmatpush1.msra.mxu0 %v587
        %589 = vmatprep.subr.mxu0 0.0
        %v590 = vand.u32 %v180, 4294901760
        %v591 = vsub.f32 %v180, %v590
        %592 = vmatpush1.msra.mxu0 %v591
        %593 = vmatprep.subr.mxu0 0.0
        %v594 = vand.u32 %v181, 4294901760
        %v595 = vsub.f32 %v181, %v594
        %596 = vmatpush1.msra.mxu0 %v595
        %597 = vmatprep.subr.mxu0 0.0
        %v598 = vand.u32 %v182, 4294901760
        %v599 = vsub.f32 %v182, %v598
        %600 = vmatpush1.msra.mxu0 %v599
        %601 = vmatprep.subr.mxu0 0.0
        %v602 = vand.u32 %v183, 4294901760
        %v603 = vsub.f32 %v183, %v602
        %604 = vmatpush1.msra.mxu0 %v603
        %605 = vmatprep.subr.mxu0 0.0
        %v606 = vand.u32 %v184, 4294901760
        %v607 = vsub.f32 %v184, %v606
        %608 = vmatpush1.msra.mxu0 %v607
        %609 = vmatprep.subr.mxu0 0.0
        %v610 = vand.u32 %v185, 4294901760
        %v611 = vsub.f32 %v185, %v610
        %612 = vmatpush1.msra.mxu0 %v611
        %613 = vmatprep.subr.mxu0 0.0
        %v614 = vand.u32 %v186, 4294901760
        %v615 = vsub.f32 %v186, %v614
        %616 = vmatpush1.msra.mxu0 %v615
        %617 = vmatprep.subr.mxu0 0.0
        %v618 = vand.u32 %v187, 4294901760
        %v619 = vsub.f32 %v187, %v618
        %620 = vmatpush1.msra.mxu0 %v619
        %621 = vmatprep.subr.mxu0 0.0
        %v622 = vand.u32 %v188, 4294901760
        %v623 = vsub.f32 %v188, %v622
        %624 = vmatpush1.msra.mxu0 %v623
        %625 = vmatprep.subr.mxu0 0.0
        %v626 = vand.u32 %v189, 4294901760
        %v627 = vsub.f32 %v189, %v626
        %628 = vmatpush1.msra.mxu0 %v627
        %629 = vmatprep.subr.mxu0 0.0
        %v630 = vand.u32 %v190, 4294901760
        %v631 = vsub.f32 %v190, %v630
        %632 = vmatpush1.msra.mxu0 %v631
        %633 = vmatprep.subr.mxu0 0.0
        %v634 = vand.u32 %v191, 4294901760
        %v635 = vsub.f32 %v191, %v634
        %636 = vmatpush1.msra.mxu0 %v635
        %637 = vmatprep.subr.mxu0 0.0
        %v638 = vand.u32 %v192, 4294901760
        %v639 = vsub.f32 %v192, %v638
        %640 = vmatpush1.msra.mxu0 %v639
        %641 = vmatprep.subr.mxu0 0.0
        %v642 = vand.u32 %v193, 4294901760
        %v643 = vsub.f32 %v193, %v642
        %644 = vmatpush1.msra.mxu0 %v643
        %645 = vmatprep.subr.mxu0 0.0
        %v646 = vand.u32 %v194, 4294901760
        %v647 = vsub.f32 %v194, %v646
        %648 = vmatpush1.msra.mxu0 %v647
        %649 = vmatprep.subr.mxu0 0.0
        %v650 = vand.u32 %v195, 4294901760
        %v651 = vsub.f32 %v195, %v650
        %652 = vmatpush1.msra.mxu0 %v651
        %653 = vmatprep.subr.mxu0 0.0
        %v654 = vand.u32 %v196, 4294901760
        %v655 = vsub.f32 %v196, %v654
        %656 = vmatpush1.msra.mxu0 %v655
        %657 = vmatprep.subr.mxu0 0.0
        %v658 = vand.u32 %v197, 4294901760
        %v659 = vsub.f32 %v197, %v658
        %660 = vmatpush1.msra.mxu0 %v659
        %661 = vmatprep.subr.mxu0 0.0
        %v662 = vand.u32 %v198, 4294901760
        %v663 = vsub.f32 %v198, %v662
        %664 = vmatpush1.msra.mxu0 %v663
        %665 = vmatprep.subr.mxu0 0.0
        %v666 = vand.u32 %v199, 4294901760
        %v667 = vsub.f32 %v199, %v666
        %668 = vmatpush1.msra.mxu0 %v667
        %669 = vmatprep.subr.mxu0 0.0
        %v670 = vand.u32 %v200, 4294901760
        %v671 = vsub.f32 %v200, %v670
        %672 = vmatpush1.msra.mxu0 %v671
        %673 = vmatprep.subr.mxu0 0.0
        %v674 = vand.u32 %v201, 4294901760
        %v675 = vsub.f32 %v201, %v674
        %676 = vmatpush1.msra.mxu0 %v675
        %v677 = vand.u32 %v203, 4294901760
        %v678 = vsub.f32 %v203, %v677
        %679 = vmatprep.mubr.f32.mxu0 %v678
        %v680 = vand.u32 %v169, 4294901760
        %v681 = vsub.f32 %v169, %v680
        %682 = vmatmul.mubr.f32.gmra.mrb[0].mxu0 %v681
        %v683 = vpop.f32.mrb[0].mxu0
        %v684 = vadd.f32 %v546, %v683
        %v685 = vpop.f32.mrb[0].mxu0
        %686 = vdwg.mxu0
        %687 = vmatprep.subr.mxu0 0.0
        %v688 = vand.u32 %v170, 4294901760
        %689 = vmatpush1.msra.mxu0 %v688
        %690 = vmatprep.subr.mxu0 0.0
        %v691 = vand.u32 %v171, 4294901760
        %692 = vmatpush1.msra.mxu0 %v691
        %693 = vmatprep.subr.mxu0 0.0
        %v694 = vand.u32 %v172, 4294901760
        %695 = vmatpush1.msra.mxu0 %v694
        %696 = vmatprep.subr.mxu0 0.0
        %v697 = vand.u32 %v173, 4294901760
        %698 = vmatpush1.msra.mxu0 %v697
        %699 = vmatprep.subr.mxu0 0.0
        %v700 = vand.u32 %v174, 4294901760
        %701 = vmatpush1.msra.mxu0 %v700
        %702 = vmatprep.subr.mxu0 0.0
        %v703 = vand.u32 %v175, 4294901760
        %704 = vmatpush1.msra.mxu0 %v703
        %705 = vmatprep.subr.mxu0 0.0
        %v706 = vand.u32 %v176, 4294901760
        %707 = vmatpush1.msra.mxu0 %v706
        %708 = vmatprep.subr.mxu0 0.0
        %v709 = vand.u32 %v177, 4294901760
        %710 = vmatpush1.msra.mxu0 %v709
        %711 = vmatprep.subr.mxu0 0.0
        %v712 = vand.u32 %v178, 4294901760
        %713 = vmatpush1.msra.mxu0 %v712
        %714 = vmatprep.subr.mxu0 0.0
        %v715 = vand.u32 %v179, 4294901760
        %716 = vmatpush1.msra.mxu0 %v715
        %717 = vmatprep.subr.mxu0 0.0
        %v718 = vand.u32 %v180, 4294901760
        %719 = vmatpush1.msra.mxu0 %v718
        %720 = vmatprep.subr.mxu0 0.0
        %v721 = vand.u32 %v181, 4294901760
        %722 = vmatpush1.msra.mxu0 %v721
        %723 = vmatprep.subr.mxu0 0.0
        %v724 = vand.u32 %v182, 4294901760
        %725 = vmatpush1.msra.mxu0 %v724
        %726 = vmatprep.subr.mxu0 0.0
        %v727 = vand.u32 %v183, 4294901760
        %728 = vmatpush1.msra.mxu0 %v727
        %729 = vmatprep.subr.mxu0 0.0
        %v730 = vand.u32 %v184, 4294901760
        %731 = vmatpush1.msra.mxu0 %v730
        %732 = vmatprep.subr.mxu0 0.0
        %v733 = vand.u32 %v185, 4294901760
        %734 = vmatpush1.msra.mxu0 %v733
        %735 = vmatprep.subr.mxu0 0.0
        %v736 = vand.u32 %v186, 4294901760
        %737 = vmatpush1.msra.mxu0 %v736
        %738 = vmatprep.subr.mxu0 0.0
        %v739 = vand.u32 %v187, 4294901760
        %740 = vmatpush1.msra.mxu0 %v739
        %741 = vmatprep.subr.mxu0 0.0
        %v742 = vand.u32 %v188, 4294901760
        %743 = vmatpush1.msra.mxu0 %v742
        %744 = vmatprep.subr.mxu0 0.0
        %v745 = vand.u32 %v189, 4294901760
        %746 = vmatpush1.msra.mxu0 %v745
        %747 = vmatprep.subr.mxu0 0.0
        %v748 = vand.u32 %v190, 4294901760
        %749 = vmatpush1.msra.mxu0 %v748
        %750 = vmatprep.subr.mxu0 0.0
        %v751 = vand.u32 %v191, 4294901760
        %752 = vmatpush1.msra.mxu0 %v751
        %753 = vmatprep.subr.mxu0 0.0
        %v754 = vand.u32 %v192, 4294901760
        %755 = vmatpush1.msra.mxu0 %v754
        %756 = vmatprep.subr.mxu0 0.0
        %v757 = vand.u32 %v193, 4294901760
        %758 = vmatpush1.msra.mxu0 %v757
        %759 = vmatprep.subr.mxu0 0.0
        %v760 = vand.u32 %v194, 4294901760
        %761 = vmatpush1.msra.mxu0 %v760
        %762 = vmatprep.subr.mxu0 0.0
        %v763 = vand.u32 %v195, 4294901760
        %764 = vmatpush1.msra.mxu0 %v763
        %765 = vmatprep.subr.mxu0 0.0
        %v766 = vand.u32 %v196, 4294901760
        %767 = vmatpush1.msra.mxu0 %v766
        %768 = vmatprep.subr.mxu0 0.0
        %v769 = vand.u32 %v197, 4294901760
        %770 = vmatpush1.msra.mxu0 %v769
        %771 = vmatprep.subr.mxu0 0.0
        %v772 = vand.u32 %v198, 4294901760
        %773 = vmatpush1.msra.mxu0 %v772
        %774 = vmatprep.subr.mxu0 0.0
        %v775 = vand.u32 %v199, 4294901760
        %776 = vmatpush1.msra.mxu0 %v775
        %777 = vmatprep.subr.mxu0 0.0
        %v778 = vand.u32 %v200, 4294901760
        %779 = vmatpush1.msra.mxu0 %v778
        %780 = vmatprep.subr.mxu0 0.0
        %v781 = vand.u32 %v201, 4294901760
        %782 = vmatpush1.msra.mxu0 %v781
        %v783 = vand.u32 %v203, 4294901760
        %v784 = vsub.f32 %v203, %v783
        %v785 = vand.u32 %v784, 4294901760
        %786 = vmatprep.mubr.f32.mxu0 %v785
        %v787 = vand.u32 %v169, 4294901760
        %v788 = vsub.f32 %v169, %v787
        %v789 = vand.u32 %v788, 4294901760
        %790 = vmatmul.mubr.f32.gmra.mrb[0].mxu0 %v789
        %v791 = vpop.f32.mrb[0].mxu0
        %v792 = vadd.f32 %v684, %v791
        %v793 = vpop.f32.mrb[0].mxu0
        %794 = vdwg.mxu0
        %795 = vmatprep.subr.mxu0 0.0
        %v796 = vand.u32 %v170, 4294901760
        %v797 = vsub.f32 %v170, %v796
        %v798 = vand.u32 %v797, 4294901760
        %799 = vmatpush1.msra.mxu0 %v798
        %800 = vmatprep.subr.mxu0 0.0
        %v801 = vand.u32 %v171, 4294901760
        %v802 = vsub.f32 %v171, %v801
        %v803 = vand.u32 %v802, 4294901760
        %804 = vmatpush1.msra.mxu0 %v803
        %805 = vmatprep.subr.mxu0 0.0
        %v806 = vand.u32 %v172, 4294901760
        %v807 = vsub.f32 %v172, %v806
        %v808 = vand.u32 %v807, 4294901760
        %809 = vmatpush1.msra.mxu0 %v808
        %810 = vmatprep.subr.mxu0 0.0
        %v811 = vand.u32 %v173, 4294901760
        %v812 = vsub.f32 %v173, %v811
        %v813 = vand.u32 %v812, 4294901760
        %814 = vmatpush1.msra.mxu0 %v813
        %815 = vmatprep.subr.mxu0 0.0
        %v816 = vand.u32 %v174, 4294901760
        %v817 = vsub.f32 %v174, %v816
        %v818 = vand.u32 %v817, 4294901760
        %819 = vmatpush1.msra.mxu0 %v818
        %820 = vmatprep.subr.mxu0 0.0
        %v821 = vand.u32 %v175, 4294901760
        %v822 = vsub.f32 %v175, %v821
        %v823 = vand.u32 %v822, 4294901760
        %824 = vmatpush1.msra.mxu0 %v823
        %825 = vmatprep.subr.mxu0 0.0
        %v826 = vand.u32 %v176, 4294901760
        %v827 = vsub.f32 %v176, %v826
        %v828 = vand.u32 %v827, 4294901760
        %829 = vmatpush1.msra.mxu0 %v828
        %830 = vmatprep.subr.mxu0 0.0
        %v831 = vand.u32 %v177, 4294901760
        %v832 = vsub.f32 %v177, %v831
        %v833 = vand.u32 %v832, 4294901760
        %834 = vmatpush1.msra.mxu0 %v833
        %835 = vmatprep.subr.mxu0 0.0
        %v836 = vand.u32 %v178, 4294901760
        %v837 = vsub.f32 %v178, %v836
        %v838 = vand.u32 %v837, 4294901760
        %839 = vmatpush1.msra.mxu0 %v838
        %840 = vmatprep.subr.mxu0 0.0
        %v841 = vand.u32 %v179, 4294901760
        %v842 = vsub.f32 %v179, %v841
        %v843 = vand.u32 %v842, 4294901760
        %844 = vmatpush1.msra.mxu0 %v843
        %845 = vmatprep.subr.mxu0 0.0
        %v846 = vand.u32 %v180, 4294901760
        %v847 = vsub.f32 %v180, %v846
        %v848 = vand.u32 %v847, 4294901760
        %849 = vmatpush1.msra.mxu0 %v848
        %850 = vmatprep.subr.mxu0 0.0
        %v851 = vand.u32 %v181, 4294901760
        %v852 = vsub.f32 %v181, %v851
        %v853 = vand.u32 %v852, 4294901760
        %854 = vmatpush1.msra.mxu0 %v853
        %855 = vmatprep.subr.mxu0 0.0
        %v856 = vand.u32 %v182, 4294901760
        %v857 = vsub.f32 %v182, %v856
        %v858 = vand.u32 %v857, 4294901760
        %859 = vmatpush1.msra.mxu0 %v858
        %860 = vmatprep.subr.mxu0 0.0
        %v861 = vand.u32 %v183, 4294901760
        %v862 = vsub.f32 %v183, %v861
        %v863 = vand.u32 %v862, 4294901760
        %864 = vmatpush1.msra.mxu0 %v863
        %865 = vmatprep.subr.mxu0 0.0
        %v866 = vand.u32 %v184, 4294901760
        %v867 = vsub.f32 %v184, %v866
        %v868 = vand.u32 %v867, 4294901760
        %869 = vmatpush1.msra.mxu0 %v868
        %870 = vmatprep.subr.mxu0 0.0
        %v871 = vand.u32 %v185, 4294901760
        %v872 = vsub.f32 %v185, %v871
        %v873 = vand.u32 %v872, 4294901760
        %874 = vmatpush1.msra.mxu0 %v873
        %875 = vmatprep.subr.mxu0 0.0
        %v876 = vand.u32 %v186, 4294901760
        %v877 = vsub.f32 %v186, %v876
        %v878 = vand.u32 %v877, 4294901760
        %879 = vmatpush1.msra.mxu0 %v878
        %880 = vmatprep.subr.mxu0 0.0
        %v881 = vand.u32 %v187, 4294901760
        %v882 = vsub.f32 %v187, %v881
        %v883 = vand.u32 %v882, 4294901760
        %884 = vmatpush1.msra.mxu0 %v883
        %885 = vmatprep.subr.mxu0 0.0
        %v886 = vand.u32 %v188, 4294901760
        %v887 = vsub.f32 %v188, %v886
        %v888 = vand.u32 %v887, 4294901760
        %889 = vmatpush1.msra.mxu0 %v888
        %890 = vmatprep.subr.mxu0 0.0
        %v891 = vand.u32 %v189, 4294901760
        %v892 = vsub.f32 %v189, %v891
        %v893 = vand.u32 %v892, 4294901760
        %894 = vmatpush1.msra.mxu0 %v893
        %895 = vmatprep.subr.mxu0 0.0
        %v896 = vand.u32 %v190, 4294901760
        %v897 = vsub.f32 %v190, %v896
        %v898 = vand.u32 %v897, 4294901760
        %899 = vmatpush1.msra.mxu0 %v898
        %900 = vmatprep.subr.mxu0 0.0
        %v901 = vand.u32 %v191, 4294901760
        %v902 = vsub.f32 %v191, %v901
        %v903 = vand.u32 %v902, 4294901760
        %904 = vmatpush1.msra.mxu0 %v903
        %905 = vmatprep.subr.mxu0 0.0
        %v906 = vand.u32 %v192, 4294901760
        %v907 = vsub.f32 %v192, %v906
        %v908 = vand.u32 %v907, 4294901760
        %909 = vmatpush1.msra.mxu0 %v908
        %910 = vmatprep.subr.mxu0 0.0
        %v911 = vand.u32 %v193, 4294901760
        %v912 = vsub.f32 %v193, %v911
        %v913 = vand.u32 %v912, 4294901760
        %914 = vmatpush1.msra.mxu0 %v913
        %915 = vmatprep.subr.mxu0 0.0
        %v916 = vand.u32 %v194, 4294901760
        %v917 = vsub.f32 %v194, %v916
        %v918 = vand.u32 %v917, 4294901760
        %919 = vmatpush1.msra.mxu0 %v918
        %920 = vmatprep.subr.mxu0 0.0
        %v921 = vand.u32 %v195, 4294901760
        %v922 = vsub.f32 %v195, %v921
        %v923 = vand.u32 %v922, 4294901760
        %924 = vmatpush1.msra.mxu0 %v923
        %925 = vmatprep.subr.mxu0 0.0
        %v926 = vand.u32 %v196, 4294901760
        %v927 = vsub.f32 %v196, %v926
        %v928 = vand.u32 %v927, 4294901760
        %929 = vmatpush1.msra.mxu0 %v928
        %930 = vmatprep.subr.mxu0 0.0
        %v931 = vand.u32 %v197, 4294901760
        %v932 = vsub.f32 %v197, %v931
        %v933 = vand.u32 %v932, 4294901760
        %934 = vmatpush1.msra.mxu0 %v933
        %935 = vmatprep.subr.mxu0 0.0
        %v936 = vand.u32 %v198, 4294901760
        %v937 = vsub.f32 %v198, %v936
        %v938 = vand.u32 %v937, 4294901760
        %939 = vmatpush1.msra.mxu0 %v938
        %940 = vmatprep.subr.mxu0 0.0
        %v941 = vand.u32 %v199, 4294901760
        %v942 = vsub.f32 %v199, %v941
        %v943 = vand.u32 %v942, 4294901760
        %944 = vmatpush1.msra.mxu0 %v943
        %945 = vmatprep.subr.mxu0 0.0
        %v946 = vand.u32 %v200, 4294901760
        %v947 = vsub.f32 %v200, %v946
        %v948 = vand.u32 %v947, 4294901760
        %949 = vmatpush1.msra.mxu0 %v948
        %950 = vmatprep.subr.mxu0 0.0
        %v951 = vand.u32 %v201, 4294901760
        %v952 = vsub.f32 %v201, %v951
        %v953 = vand.u32 %v952, 4294901760
        %954 = vmatpush1.msra.mxu0 %v953
        %v955 = vand.u32 %v203, 4294901760
        %956 = vmatprep.mubr.f32.mxu0 %v955
        %v957 = vand.u32 %v169, 4294901760
        %958 = vmatmul.mubr.f32.gmra.mrb[0].mxu0 %v957
        %v959 = vpop.f32.mrb[0].mxu0
        %v960 = vadd.f32 %v792, %v959
        %v961 = vpop.f32.mrb[0].mxu0
        %962 = vdwg.mxu0
        %963 = vmatprep.subr.mxu0 0.0
        %v964 = vand.u32 %v170, 4294901760
        %965 = vmatpush1.msra.mxu0 %v964
        %966 = vmatprep.subr.mxu0 0.0
        %v967 = vand.u32 %v171, 4294901760
        %968 = vmatpush1.msra.mxu0 %v967
        %969 = vmatprep.subr.mxu0 0.0
        %v970 = vand.u32 %v172, 4294901760
        %971 = vmatpush1.msra.mxu0 %v970
        %972 = vmatprep.subr.mxu0 0.0
        %v973 = vand.u32 %v173, 4294901760
        %974 = vmatpush1.msra.mxu0 %v973
        %975 = vmatprep.subr.mxu0 0.0
        %v976 = vand.u32 %v174, 4294901760
        %977 = vmatpush1.msra.mxu0 %v976
        %978 = vmatprep.subr.mxu0 0.0
        %v979 = vand.u32 %v175, 4294901760
        %980 = vmatpush1.msra.mxu0 %v979
        %981 = vmatprep.subr.mxu0 0.0
        %v982 = vand.u32 %v176, 4294901760
        %983 = vmatpush1.msra.mxu0 %v982
        %984 = vmatprep.subr.mxu0 0.0
        %v985 = vand.u32 %v177, 4294901760
        %986 = vmatpush1.msra.mxu0 %v985
        %987 = vmatprep.subr.mxu0 0.0
        %v988 = vand.u32 %v178, 4294901760
        %989 = vmatpush1.msra.mxu0 %v988
        %990 = vmatprep.subr.mxu0 0.0
        %v991 = vand.u32 %v179, 4294901760
        %992 = vmatpush1.msra.mxu0 %v991
        %993 = vmatprep.subr.mxu0 0.0
        %v994 = vand.u32 %v180, 4294901760
        %995 = vmatpush1.msra.mxu0 %v994
        %996 = vmatprep.subr.mxu0 0.0
        %v997 = vand.u32 %v181, 4294901760
        %998 = vmatpush1.msra.mxu0 %v997
        %999 = vmatprep.subr.mxu0 0.0
        %v1000 = vand.u32 %v182, 4294901760
        %1001 = vmatpush1.msra.mxu0 %v1000
        %1002 = vmatprep.subr.mxu0 0.0
        %v1003 = vand.u32 %v183, 4294901760
        %1004 = vmatpush1.msra.mxu0 %v1003
        %1005 = vmatprep.subr.mxu0 0.0
        %v1006 = vand.u32 %v184, 4294901760
        %1007 = vmatpush1.msra.mxu0 %v1006
        %1008 = vmatprep.subr.mxu0 0.0
        %v1009 = vand.u32 %v185, 4294901760
        %1010 = vmatpush1.msra.mxu0 %v1009
        %1011 = vmatprep.subr.mxu0 0.0
        %v1012 = vand.u32 %v186, 4294901760
        %1013 = vmatpush1.msra.mxu0 %v1012
        %1014 = vmatprep.subr.mxu0 0.0
        %v1015 = vand.u32 %v187, 4294901760
        %1016 = vmatpush1.msra.mxu0 %v1015
        %1017 = vmatprep.subr.mxu0 0.0
        %v1018 = vand.u32 %v188, 4294901760
        %1019 = vmatpush1.msra.mxu0 %v1018
        %1020 = vmatprep.subr.mxu0 0.0
        %v1021 = vand.u32 %v189, 4294901760
        %1022 = vmatpush1.msra.mxu0 %v1021
        %1023 = vmatprep.subr.mxu0 0.0
        %v1024 = vand.u32 %v190, 4294901760
        %1025 = vmatpush1.msra.mxu0 %v1024
        %1026 = vmatprep.subr.mxu0 0.0
        %v1027 = vand.u32 %v191, 4294901760
        %1028 = vmatpush1.msra.mxu0 %v1027
        %1029 = vmatprep.subr.mxu0 0.0
        %v1030 = vand.u32 %v192, 4294901760
        %1031 = vmatpush1.msra.mxu0 %v1030
        %1032 = vmatprep.subr.mxu0 0.0
        %v1033 = vand.u32 %v193, 4294901760
        %1034 = vmatpush1.msra.mxu0 %v1033
        %1035 = vmatprep.subr.mxu0 0.0
        %v1036 = vand.u32 %v194, 4294901760
        %1037 = vmatpush1.msra.mxu0 %v1036
        %1038 = vmatprep.subr.mxu0 0.0
        %v1039 = vand.u32 %v195, 4294901760
        %1040 = vmatpush1.msra.mxu0 %v1039
        %1041 = vmatprep.subr.mxu0 0.0
        %v1042 = vand.u32 %v196, 4294901760
        %1043 = vmatpush1.msra.mxu0 %v1042
        %1044 = vmatprep.subr.mxu0 0.0
        %v1045 = vand.u32 %v197, 4294901760
        %1046 = vmatpush1.msra.mxu0 %v1045
        %1047 = vmatprep.subr.mxu0 0.0
        %v1048 = vand.u32 %v198, 4294901760
        %1049 = vmatpush1.msra.mxu0 %v1048
        %1050 = vmatprep.subr.mxu0 0.0
        %v1051 = vand.u32 %v199, 4294901760
        %1052 = vmatpush1.msra.mxu0 %v1051
        %1053 = vmatprep.subr.mxu0 0.0
        %v1054 = vand.u32 %v200, 4294901760
        %1055 = vmatpush1.msra.mxu0 %v1054
        %1056 = vmatprep.subr.mxu0 0.0
        %v1057 = vand.u32 %v201, 4294901760
        %1058 = vmatpush1.msra.mxu0 %v1057
        %v1059 = vand.u32 %v203, 4294901760
        %1060 = vmatprep.mubr.f32.mxu0 %v1059
        %v1061 = vand.u32 %v169, 4294901760
        %1062 = vmatmul.mubr.f32.gmra.mrb[0].mxu0 %v1061
        %v1063 = vpop.f32.mrb[0].mxu0
        %v1064 = vadd.f32 %v960, %v1063
        %v1065 = vpop.f32.mrb[0].mxu0
        %1066 = vdwg.mxu0
        %v1067 = vld [vmem:[%s2] sm:$0xff]
        %vm1068 = vcmask 31744
        %v1070 = vsel %vm1068, %v1067, 0
        %vm1072 = vcmask 1043456
        %v1074 = vsel %vm1072, %v1064, 0
        %1076 = vmatprep.subr.mxu0 0.0
        %v1077 = vand.u32 %v1074, 4294901760
        %1078 = vmatpush1.msra.mxu0 %v1077
        %1079 = vmatprep.subr.mxu0 0.0
        %1080 = vmatpush1.msra.mxu0 0.0
        %1081 = vmatprep.subr.mxu0 0.0
        %1082 = vmatpush1.msra.mxu0 0.0
        %1083 = vmatprep.subr.mxu0 0.0
        %1084 = vmatpush1.msra.mxu0 0.0
        %1085 = vmatprep.subr.mxu0 0.0
        %1086 = vmatpush1.msra.mxu0 0.0
        %1087 = vmatprep.subr.mxu0 0.0
        %1088 = vmatpush1.msra.mxu0 0.0
        %1089 = vmatprep.subr.mxu0 0.0
        %1090 = vmatpush1.msra.mxu0 0.0
        %1091 = vmatprep.subr.mxu0 0.0
        %1092 = vmatpush1.msra.mxu0 0.0
        %1093 = vmatprep.subr.mxu0 0.0
        %1094 = vmatpush1.msra.mxu0 0.0
        %1095 = vmatprep.subr.mxu0 0.0
        %1096 = vmatpush1.msra.mxu0 0.0
        %1097 = vmatprep.subr.mxu0 0.0
        %1098 = vmatpush1.msra.mxu0 0.0
        %1099 = vmatprep.subr.mxu0 0.0
        %1100 = vmatpush1.msra.mxu0 0.0
        %1101 = vmatprep.subr.mxu0 0.0
        %1102 = vmatpush1.msra.mxu0 0.0
        %1103 = vmatprep.subr.mxu0 0.0
        %1104 = vmatpush1.msra.mxu0 0.0
        %1105 = vmatprep.subr.mxu0 0.0
        %1106 = vmatpush1.msra.mxu0 0.0
        %1107 = vmatprep.subr.mxu0 0.0
        %1108 = vmatpush1.msra.mxu0 0.0
        %1109 = vmatprep.subr.mxu0 0.0
        %1110 = vmatpush1.msra.mxu0 0.0
        %1111 = vmatprep.subr.mxu0 0.0
        %1112 = vmatpush1.msra.mxu0 0.0
        %1113 = vmatprep.subr.mxu0 0.0
        %1114 = vmatpush1.msra.mxu0 0.0
        %1115 = vmatprep.subr.mxu0 0.0
        %1116 = vmatpush1.msra.mxu0 0.0
        %1117 = vmatprep.subr.mxu0 0.0
        %1118 = vmatpush1.msra.mxu0 0.0
        %1119 = vmatprep.subr.mxu0 0.0
        %1120 = vmatpush1.msra.mxu0 0.0
        %1121 = vmatprep.subr.mxu0 0.0
        %1122 = vmatpush1.msra.mxu0 0.0
        %1123 = vmatprep.subr.mxu0 0.0
        %1124 = vmatpush1.msra.mxu0 0.0
        %1125 = vmatprep.subr.mxu0 0.0
        %1126 = vmatpush1.msra.mxu0 0.0
        %1127 = vmatprep.subr.mxu0 0.0
        %1128 = vmatpush1.msra.mxu0 0.0
        %1129 = vmatprep.subr.mxu0 0.0
        %1130 = vmatpush1.msra.mxu0 0.0
        %1131 = vmatprep.subr.mxu0 0.0
        %1132 = vmatpush1.msra.mxu0 0.0
        %1133 = vmatprep.subr.mxu0 0.0
        %1134 = vmatpush1.msra.mxu0 0.0
        %1135 = vmatprep.subr.mxu0 0.0
        %1136 = vmatpush1.msra.mxu0 0.0
        %1137 = vmatprep.subr.mxu0 0.0
        %1138 = vmatpush1.msra.mxu0 0.0
        %1139 = vmatprep.subr.mxu0 0.0
        %1140 = vmatpush1.msra.mxu0 0.0
        %1141 = vmatprep.mubr.f32.mxu0 0.0
        %v1142 = vand.u32 %v1070, 4294901760
        %v1143 = vsub.f32 %v1070, %v1142
        %v1144 = vand.u32 %v1143, 4294901760
        %v1145 = vsub.f32 %v1143, %v1144
        %v1146 = vand.u32 %v1145, 4294901760
        %1147 = vmatmul.mubr.f32.gmra.mrb[0].mxu0 %v1146
        %v1148 = vpop.f32.mrb[0].mxu0
        %v1149 = vadd.f32 0.0, %v1148
        %v1150 = vpop.f32.mrb[0].mxu0
        %1151 = vdwg.mxu0
        %1152 = vmatprep.subr.mxu0 0.0
        %v1153 = vand.u32 %v1074, 4294901760
        %v1154 = vsub.f32 %v1074, %v1153
        %v1155 = vand.u32 %v1154, 4294901760
        %v1156 = vsub.f32 %v1154, %v1155
        %v1157 = vand.u32 %v1156, 4294901760
        %1158 = vmatpush1.msra.mxu0 %v1157
        %1159 = vmatprep.subr.mxu0 0.0
        %1160 = vmatpush1.msra.mxu0 0.0
        %1161 = vmatprep.subr.mxu0 0.0
        %1162 = vmatpush1.msra.mxu0 0.0
        %1163 = vmatprep.subr.mxu0 0.0
        %1164 = vmatpush1.msra.mxu0 0.0
        %1165 = vmatprep.subr.mxu0 0.0
        %1166 = vmatpush1.msra.mxu0 0.0
        %1167 = vmatprep.subr.mxu0 0.0
        %1168 = vmatpush1.msra.mxu0 0.0
        %1169 = vmatprep.subr.mxu0 0.0
        %1170 = vmatpush1.msra.mxu0 0.0
        %1171 = vmatprep.subr.mxu0 0.0
        %1172 = vmatpush1.msra.mxu0 0.0
        %1173 = vmatprep.subr.mxu0 0.0
        %1174 = vmatpush1.msra.mxu0 0.0
        %1175 = vmatprep.subr.mxu0 0.0
        %1176 = vmatpush1.msra.mxu0 0.0
        %1177 = vmatprep.subr.mxu0 0.0
        %1178 = vmatpush1.msra.mxu0 0.0
        %1179 = vmatprep.subr.mxu0 0.0
        %1180 = vmatpush1.msra.mxu0 0.0
        %1181 = vmatprep.subr.mxu0 0.0
        %1182 = vmatpush1.msra.mxu0 0.0
        %1183 = vmatprep.subr.mxu0 0.0
        %1184 = vmatpush1.msra.mxu0 0.0
        %1185 = vmatprep.subr.mxu0 0.0
        %1186 = vmatpush1.msra.mxu0 0.0
        %1187 = vmatprep.subr.mxu0 0.0
        %1188 = vmatpush1.msra.mxu0 0.0
        %1189 = vmatprep.subr.mxu0 0.0
        %1190 = vmatpush1.msra.mxu0 0.0
        %1191 = vmatprep.subr.mxu0 0.0
        %1192 = vmatpush1.msra.mxu0 0.0
        %1193 = vmatprep.subr.mxu0 0.0
        %1194 = vmatpush1.msra.mxu0 0.0
        %1195 = vmatprep.subr.mxu0 0.0
        %1196 = vmatpush1.msra.mxu0 0.0
        %1197 = vmatprep.subr.mxu0 0.0
        %1198 = vmatpush1.msra.mxu0 0.0
        %1199 = vmatprep.subr.mxu0 0.0
        %1200 = vmatpush1.msra.mxu0 0.0
        %1201 = vmatprep.subr.mxu0 0.0
        %1202 = vmatpush1.msra.mxu0 0.0
        %1203 = vmatprep.subr.mxu0 0.0
        %1204 = vmatpush1.msra.mxu0 0.0
        %1205 = vmatprep.subr.mxu0 0.0
        %1206 = vmatpush1.msra.mxu0 0.0
        %1207 = vmatprep.subr.mxu0 0.0
        %1208 = vmatpush1.msra.mxu0 0.0
        %1209 = vmatprep.subr.mxu0 0.0
        %1210 = vmatpush1.msra.mxu0 0.0
        %1211 = vmatprep.subr.mxu0 0.0
        %1212 = vmatpush1.msra.mxu0 0.0
        %1213 = vmatprep.subr.mxu0 0.0
        %1214 = vmatpush1.msra.mxu0 0.0
        %1215 = vmatprep.subr.mxu0 0.0
        %1216 = vmatpush1.msra.mxu0 0.0
        %1217 = vmatprep.subr.mxu0 0.0
        %1218 = vmatpush1.msra.mxu0 0.0
        %1219 = vmatprep.subr.mxu0 0.0
        %1220 = vmatpush1.msra.mxu0 0.0
        %1221 = vmatprep.mubr.f32.mxu0 0.0
        %v1222 = vand.u32 %v1070, 4294901760
        %1223 = vmatmul.mubr.f32.gmra.mrb[0].mxu0 %v1222
        %v1224 = vpop.f32.mrb[0].mxu0
        %v1225 = vadd.f32 %v1149, %v1224
        %v1226 = vpop.f32.mrb[0].mxu0
        %1227 = vdwg.mxu0
        %1228 = vmatprep.subr.mxu0 0.0
        %v1229 = vand.u32 %v1074, 4294901760
        %v1230 = vsub.f32 %v1074, %v1229
        %1231 = vmatpush1.msra.mxu0 %v1230
        %1232 = vmatprep.subr.mxu0 0.0
        %1233 = vmatpush1.msra.mxu0 0.0
        %1234 = vmatprep.subr.mxu0 0.0
        %1235 = vmatpush1.msra.mxu0 0.0
        %1236 = vmatprep.subr.mxu0 0.0
        %1237 = vmatpush1.msra.mxu0 0.0
        %1238 = vmatprep.subr.mxu0 0.0
        %1239 = vmatpush1.msra.mxu0 0.0
        %1240 = vmatprep.subr.mxu0 0.0
        %1241 = vmatpush1.msra.mxu0 0.0
        %1242 = vmatprep.subr.mxu0 0.0
        %1243 = vmatpush1.msra.mxu0 0.0
        %1244 = vmatprep.subr.mxu0 0.0
        %1245 = vmatpush1.msra.mxu0 0.0
        %1246 = vmatprep.subr.mxu0 0.0
        %1247 = vmatpush1.msra.mxu0 0.0
        %1248 = vmatprep.subr.mxu0 0.0
        %1249 = vmatpush1.msra.mxu0 0.0
        %1250 = vmatprep.subr.mxu0 0.0
        %1251 = vmatpush1.msra.mxu0 0.0
        %1252 = vmatprep.subr.mxu0 0.0
        %1253 = vmatpush1.msra.mxu0 0.0
        %1254 = vmatprep.subr.mxu0 0.0
        %1255 = vmatpush1.msra.mxu0 0.0
        %1256 = vmatprep.subr.mxu0 0.0
        %1257 = vmatpush1.msra.mxu0 0.0
        %1258 = vmatprep.subr.mxu0 0.0
        %1259 = vmatpush1.msra.mxu0 0.0
        %1260 = vmatprep.subr.mxu0 0.0
        %1261 = vmatpush1.msra.mxu0 0.0
        %1262 = vmatprep.subr.mxu0 0.0
        %1263 = vmatpush1.msra.mxu0 0.0
        %1264 = vmatprep.subr.mxu0 0.0
        %1265 = vmatpush1.msra.mxu0 0.0
        %1266 = vmatprep.subr.mxu0 0.0
        %1267 = vmatpush1.msra.mxu0 0.0
        %1268 = vmatprep.subr.mxu0 0.0
        %1269 = vmatpush1.msra.mxu0 0.0
        %1270 = vmatprep.subr.mxu0 0.0
        %1271 = vmatpush1.msra.mxu0 0.0
        %1272 = vmatprep.subr.mxu0 0.0
        %1273 = vmatpush1.msra.mxu0 0.0
        %1274 = vmatprep.subr.mxu0 0.0
        %1275 = vmatpush1.msra.mxu0 0.0
        %1276 = vmatprep.subr.mxu0 0.0
        %1277 = vmatpush1.msra.mxu0 0.0
        %1278 = vmatprep.subr.mxu0 0.0
        %1279 = vmatpush1.msra.mxu0 0.0
        %1280 = vmatprep.subr.mxu0 0.0
        %1281 = vmatpush1.msra.mxu0 0.0
        %1282 = vmatprep.subr.mxu0 0.0
        %1283 = vmatpush1.msra.mxu0 0.0
        %1284 = vmatprep.subr.mxu0 0.0
        %1285 = vmatpush1.msra.mxu0 0.0
        %1286 = vmatprep.subr.mxu0 0.0
        %1287 = vmatpush1.msra.mxu0 0.0
        %1288 = vmatprep.subr.mxu0 0.0
        %1289 = vmatpush1.msra.mxu0 0.0
        %1290 = vmatprep.subr.mxu0 0.0
        %1291 = vmatpush1.msra.mxu0 0.0
        %1292 = vmatprep.subr.mxu0 0.0
        %1293 = vmatpush1.msra.mxu0 0.0
        %1294 = vmatprep.mubr.f32.mxu0 0.0
        %v1295 = vand.u32 %v1070, 4294901760
        %v1296 = vsub.f32 %v1070, %v1295
        %1297 = vmatmul.mubr.f32.gmra.mrb[0].mxu0 %v1296
        %v1298 = vpop.f32.mrb[0].mxu0
        %v1299 = vadd.f32 %v1225, %v1298
        %v1300 = vpop.f32.mrb[0].mxu0
        %1301 = vdwg.mxu0
        %1302 = vmatprep.subr.mxu0 0.0
        %v1303 = vand.u32 %v1074, 4294901760
        %1304 = vmatpush1.msra.mxu0 %v1303
        %1305 = vmatprep.subr.mxu0 0.0
        %1306 = vmatpush1.msra.mxu0 0.0
        %1307 = vmatprep.subr.mxu0 0.0
        %1308 = vmatpush1.msra.mxu0 0.0
        %1309 = vmatprep.subr.mxu0 0.0
        %1310 = vmatpush1.msra.mxu0 0.0
        %1311 = vmatprep.subr.mxu0 0.0
        %1312 = vmatpush1.msra.mxu0 0.0
        %1313 = vmatprep.subr.mxu0 0.0
        %1314 = vmatpush1.msra.mxu0 0.0
        %1315 = vmatprep.subr.mxu0 0.0
        %1316 = vmatpush1.msra.mxu0 0.0
        %1317 = vmatprep.subr.mxu0 0.0
        %1318 = vmatpush1.msra.mxu0 0.0
        %1319 = vmatprep.subr.mxu0 0.0
        %1320 = vmatpush1.msra.mxu0 0.0
        %1321 = vmatprep.subr.mxu0 0.0
        %1322 = vmatpush1.msra.mxu0 0.0
        %1323 = vmatprep.subr.mxu0 0.0
        %1324 = vmatpush1.msra.mxu0 0.0
        %1325 = vmatprep.subr.mxu0 0.0
        %1326 = vmatpush1.msra.mxu0 0.0
        %1327 = vmatprep.subr.mxu0 0.0
        %1328 = vmatpush1.msra.mxu0 0.0
        %1329 = vmatprep.subr.mxu0 0.0
        %1330 = vmatpush1.msra.mxu0 0.0
        %1331 = vmatprep.subr.mxu0 0.0
        %1332 = vmatpush1.msra.mxu0 0.0
        %1333 = vmatprep.subr.mxu0 0.0
        %1334 = vmatpush1.msra.mxu0 0.0
        %1335 = vmatprep.subr.mxu0 0.0
        %1336 = vmatpush1.msra.mxu0 0.0
        %1337 = vmatprep.subr.mxu0 0.0
        %1338 = vmatpush1.msra.mxu0 0.0
        %1339 = vmatprep.subr.mxu0 0.0
        %1340 = vmatpush1.msra.mxu0 0.0
        %1341 = vmatprep.subr.mxu0 0.0
        %1342 = vmatpush1.msra.mxu0 0.0
        %1343 = vmatprep.subr.mxu0 0.0
        %1344 = vmatpush1.msra.mxu0 0.0
        %1345 = vmatprep.subr.mxu0 0.0
        %1346 = vmatpush1.msra.mxu0 0.0
        %1347 = vmatprep.subr.mxu0 0.0
        %1348 = vmatpush1.msra.mxu0 0.0
        %1349 = vmatprep.subr.mxu0 0.0
        %1350 = vmatpush1.msra.mxu0 0.0
        %1351 = vmatprep.subr.mxu0 0.0
        %1352 = vmatpush1.msra.mxu0 0.0
        %1353 = vmatprep.subr.mxu0 0.0
        %1354 = vmatpush1.msra.mxu0 0.0
        %1355 = vmatprep.subr.mxu0 0.0
        %1356 = vmatpush1.msra.mxu0 0.0
        %1357 = vmatprep.subr.mxu0 0.0
        %1358 = vmatpush1.msra.mxu0 0.0
        %1359 = vmatprep.subr.mxu0 0.0
        %1360 = vmatpush1.msra.mxu0 0.0
        %1361 = vmatprep.subr.mxu0 0.0
        %1362 = vmatpush1.msra.mxu0 0.0
        %1363 = vmatprep.subr.mxu0 0.0
        %1364 = vmatpush1.msra.mxu0 0.0
        %1365 = vmatprep.subr.mxu0 0.0
        %1366 = vmatpush1.msra.mxu0 0.0
        %1367 = vmatprep.mubr.f32.mxu0 0.0
        %v1368 = vand.u32 %v1070, 4294901760
        %v1369 = vsub.f32 %v1070, %v1368
        %v1370 = vand.u32 %v1369, 4294901760
        %1371 = vmatmul.mubr.f32.gmra.mrb[0].mxu0 %v1370
        %v1372 = vpop.f32.mrb[0].mxu0
        %v1373 = vadd.f32 %v1299, %v1372
        %v1374 = vpop.f32.mrb[0].mxu0
        %1375 = vdwg.mxu0
        %1376 = vmatprep.subr.mxu0 0.0
        %v1377 = vand.u32 %v1074, 4294901760
        %v1378 = vsub.f32 %v1074, %v1377
        %v1379 = vand.u32 %v1378, 4294901760
        %1380 = vmatpush1.msra.mxu0 %v1379
        %1381 = vmatprep.subr.mxu0 0.0
        %1382 = vmatpush1.msra.mxu0 0.0
        %1383 = vmatprep.subr.mxu0 0.0
        %1384 = vmatpush1.msra.mxu0 0.0
        %1385 = vmatprep.subr.mxu0 0.0
        %1386 = vmatpush1.msra.mxu0 0.0
        %1387 = vmatprep.subr.mxu0 0.0
        %1388 = vmatpush1.msra.mxu0 0.0
        %1389 = vmatprep.subr.mxu0 0.0
        %1390 = vmatpush1.msra.mxu0 0.0
        %1391 = vmatprep.subr.mxu0 0.0
        %1392 = vmatpush1.msra.mxu0 0.0
        %1393 = vmatprep.subr.mxu0 0.0
        %1394 = vmatpush1.msra.mxu0 0.0
        %1395 = vmatprep.subr.mxu0 0.0
        %1396 = vmatpush1.msra.mxu0 0.0
        %1397 = vmatprep.subr.mxu0 0.0
        %1398 = vmatpush1.msra.mxu0 0.0
        %1399 = vmatprep.subr.mxu0 0.0
        %1400 = vmatpush1.msra.mxu0 0.0
        %1401 = vmatprep.subr.mxu0 0.0
        %1402 = vmatpush1.msra.mxu0 0.0
        %1403 = vmatprep.subr.mxu0 0.0
        %1404 = vmatpush1.msra.mxu0 0.0
        %1405 = vmatprep.subr.mxu0 0.0
        %1406 = vmatpush1.msra.mxu0 0.0
        %1407 = vmatprep.subr.mxu0 0.0
        %1408 = vmatpush1.msra.mxu0 0.0
        %1409 = vmatprep.subr.mxu0 0.0
        %1410 = vmatpush1.msra.mxu0 0.0
        %1411 = vmatprep.subr.mxu0 0.0
        %1412 = vmatpush1.msra.mxu0 0.0
        %1413 = vmatprep.subr.mxu0 0.0
        %1414 = vmatpush1.msra.mxu0 0.0
        %1415 = vmatprep.subr.mxu0 0.0
        %1416 = vmatpush1.msra.mxu0 0.0
        %1417 = vmatprep.subr.mxu0 0.0
        %1418 = vmatpush1.msra.mxu0 0.0
        %1419 = vmatprep.subr.mxu0 0.0
        %1420 = vmatpush1.msra.mxu0 0.0
        %1421 = vmatprep.subr.mxu0 0.0
        %1422 = vmatpush1.msra.mxu0 0.0
        %1423 = vmatprep.subr.mxu0 0.0
        %1424 = vmatpush1.msra.mxu0 0.0
        %1425 = vmatprep.subr.mxu0 0.0
        %1426 = vmatpush1.msra.mxu0 0.0
        %1427 = vmatprep.subr.mxu0 0.0
        %1428 = vmatpush1.msra.mxu0 0.0
        %1429 = vmatprep.subr.mxu0 0.0
        %1430 = vmatpush1.msra.mxu0 0.0
        %1431 = vmatprep.subr.mxu0 0.0
        %1432 = vmatpush1.msra.mxu0 0.0
        %1433 = vmatprep.subr.mxu0 0.0
        %1434 = vmatpush1.msra.mxu0 0.0
        %1435 = vmatprep.subr.mxu0 0.0
        %1436 = vmatpush1.msra.mxu0 0.0
        %1437 = vmatprep.subr.mxu0 0.0
        %1438 = vmatpush1.msra.mxu0 0.0
        %1439 = vmatprep.subr.mxu0 0.0
        %1440 = vmatpush1.msra.mxu0 0.0
        %1441 = vmatprep.subr.mxu0 0.0
        %1442 = vmatpush1.msra.mxu0 0.0
        %1443 = vmatprep.mubr.f32.mxu0 0.0
        %v1444 = vand.u32 %v1070, 4294901760
        %1445 = vmatmul.mubr.f32.gmra.mrb[0].mxu0 %v1444
        %v1446 = vpop.f32.mrb[0].mxu0
        %v1447 = vadd.f32 %v1373, %v1446
        %v1448 = vpop.f32.mrb[0].mxu0
        %1449 = vdwg.mxu0
        %1450 = vmatprep.subr.mxu0 0.0
        %v1451 = vand.u32 %v1074, 4294901760
        %1452 = vmatpush1.msra.mxu0 %v1451
        %1453 = vmatprep.subr.mxu0 0.0
        %1454 = vmatpush1.msra.mxu0 0.0
        %1455 = vmatprep.subr.mxu0 0.0
        %1456 = vmatpush1.msra.mxu0 0.0
        %1457 = vmatprep.subr.mxu0 0.0
        %1458 = vmatpush1.msra.mxu0 0.0
        %1459 = vmatprep.subr.mxu0 0.0
        %1460 = vmatpush1.msra.mxu0 0.0
        %1461 = vmatprep.subr.mxu0 0.0
        %1462 = vmatpush1.msra.mxu0 0.0
        %1463 = vmatprep.subr.mxu0 0.0
        %1464 = vmatpush1.msra.mxu0 0.0
        %1465 = vmatprep.subr.mxu0 0.0
        %1466 = vmatpush1.msra.mxu0 0.0
        %1467 = vmatprep.subr.mxu0 0.0
        %1468 = vmatpush1.msra.mxu0 0.0
        %1469 = vmatprep.subr.mxu0 0.0
        %1470 = vmatpush1.msra.mxu0 0.0
        %1471 = vmatprep.subr.mxu0 0.0
        %1472 = vmatpush1.msra.mxu0 0.0
        %1473 = vmatprep.subr.mxu0 0.0
        %1474 = vmatpush1.msra.mxu0 0.0
        %1475 = vmatprep.subr.mxu0 0.0
        %1476 = vmatpush1.msra.mxu0 0.0
        %1477 = vmatprep.subr.mxu0 0.0
        %1478 = vmatpush1.msra.mxu0 0.0
        %1479 = vmatprep.subr.mxu0 0.0
        %1480 = vmatpush1.msra.mxu0 0.0
        %1481 = vmatprep.subr.mxu0 0.0
        %1482 = vmatpush1.msra.mxu0 0.0
        %1483 = vmatprep.subr.mxu0 0.0
        %1484 = vmatpush1.msra.mxu0 0.0
        %1485 = vmatprep.subr.mxu0 0.0
        %1486 = vmatpush1.msra.mxu0 0.0
        %1487 = vmatprep.subr.mxu0 0.0
        %1488 = vmatpush1.msra.mxu0 0.0
        %1489 = vmatprep.subr.mxu0 0.0
        %1490 = vmatpush1.msra.mxu0 0.0
        %1491 = vmatprep.subr.mxu0 0.0
        %1492 = vmatpush1.msra.mxu0 0.0
        %1493 = vmatprep.subr.mxu0 0.0
        %1494 = vmatpush1.msra.mxu0 0.0
        %1495 = vmatprep.subr.mxu0 0.0
        %1496 = vmatpush1.msra.mxu0 0.0
        %1497 = vmatprep.subr.mxu0 0.0
        %1498 = vmatpush1.msra.mxu0 0.0
        %1499 = vmatprep.subr.mxu0 0.0
        %1500 = vmatpush1.msra.mxu0 0.0
        %1501 = vmatprep.subr.mxu0 0.0
        %1502 = vmatpush1.msra.mxu0 0.0
        %1503 = vmatprep.subr.mxu0 0.0
        %1504 = vmatpush1.msra.mxu0 0.0
        %1505 = vmatprep.subr.mxu0 0.0
        %1506 = vmatpush1.msra.mxu0 0.0
        %1507 = vmatprep.subr.mxu0 0.0
        %1508 = vmatpush1.msra.mxu0 0.0
        %1509 = vmatprep.subr.mxu0 0.0
        %1510 = vmatpush1.msra.mxu0 0.0
        %1511 = vmatprep.subr.mxu0 0.0
        %1512 = vmatpush1.msra.mxu0 0.0
        %1513 = vmatprep.subr.mxu0 0.0
        %1514 = vmatpush1.msra.mxu0 0.0
        %1515 = vmatprep.mubr.f32.mxu0 0.0
        %v1516 = vand.u32 %v1070, 4294901760
        %1517 = vmatmul.mubr.f32.gmra.mrb[0].mxu0 %v1516
        %v1518 = vpop.f32.mrb[0].mxu0
        %v1519 = vadd.f32 %v1447, %v1518
        %v1520 = vpop.f32.mrb[0].mxu0
        %1521 = vdwg.mxu0
        %vm1522 = vcmask 523264
        %1523 = vst.msk [vmem:[%s163] sm:$0xff] %vm1522, %v1519
        %s1524 = sand.u32 %s93, 1
        %s1525 = scalar_lea.sflag [#allocation3], %s1524
        %s1526 = sand.u32 %s93, 1
        %s1527 = smul.addr %s1526, 8
        %s1528 = scalar_lea.vmem [#allocation2], %s1527
        // Predicated region
        $region33: #{tpu_custom_call.1} parent=31 // pred_check
          %p1529 = pneg %p103
        $region34: #{tpu_custom_call.1} parent=31 // pred_check_branch
          %1531 = sbr.rel (%p1529) target = $region36
        $region35: #{tpu_custom_call.1} parent=31 // pred_region
          %s1533 = ssub.s32 128, 128
          %1534 = vsyncadd %s1525, %s1533
          %s1535 = smul.addr %s17, 128
          %s1536 = scalar_lea.hbm %s3, %s1535
          %s1538 = sshll.u32 %s1528, 4
          %s1539 = int_to_ptr.vmem [resolvable:$true] %s1538
          %1541 = dma.vmem_to_hbm [thread:$0]  %s1539, 128, %s1536, %s1525
        $region36: #{tpu_custom_call.1} parent=31 // pred_fallthru
          _
      $region32: #{tpu_custom_call.1} parent=5 // pred_fallthru
        _
      %p1542 = scmp.le.s32.totalorder 2, %s12
      // Predicated region
      $region37: #{tpu_custom_call.1} parent=5 // pred_check
        %p1543 = pneg %p1542
      $region38: #{tpu_custom_call.1} parent=5 // pred_check_branch
        %1545 = sbr.rel (%p1543) target = $region40
      $region39: #{tpu_custom_call.1} parent=5 // pred_region
        %s1546 = ssub.s32 %s12, 2
        // Predicated region
        $region41: #{tpu_custom_call.1} parent=39 // pred_check
          %p1547 = pneg %p109
        $region42: #{tpu_custom_call.1} parent=39 // pred_check_branch
          %1549 = sbr.rel (%p1547) target = $region44
        $region43: #{tpu_custom_call.1} parent=39 // pred_region
          %s1550 = sand.u32 %s94, 1
          %s1551 = scalar_lea.sflag [#allocation3], %s1550
          %s1552 = sand.u32 %s94, 1
          %s1553 = smul.addr %s1552, 8
          %s1554 = scalar_lea.vmem [#allocation2], %s1553
          %1555 = dma.done %s1551, 128
        $region44: #{tpu_custom_call.1} parent=39 // pred_fallthru
          _
      $region40: #{tpu_custom_call.1} parent=5 // pred_fallthru
        _
    $region6: #{tpu_custom_call.1} parent=1 // loop_footer
      %s16 = sadd.s32 1, %s12
    $region7: #{tpu_custom_call.1} parent=1 // loop_footer_branch
      %11 = sbr.rel target = $region3
    $region8: #{tpu_custom_call.1} parent=1 // loop_exit
      _
    %1556 = vsyncpa [#allocation3], 1
    %s1557 = scalar_lea.sflag [#allocation3], 1
    %1558 = vsyncpa %s1557, 1

</llo_original>
